<compile_context>
chip_gen: v6e
topology: v6e:2x2x1
jax: 0.10.0
libtpu: 0.0.40
codegen_flags: <defaults>
</compile_context>

<pallas_src>
import jax
import jax.numpy as jnp
from jax.experimental import pallas as pl
from jax.experimental.pallas import tpu as pltpu


def gru_decoder_kernel(h0_ref, wrec_ref, b_rz0_ref, b_rz1_ref,
                       b_n0_ref, b_n1_ref, b_hn_ref,
                       w1_ref, b1_ref, w2_ref, b2_ref,
                       out_ref):
    """Full autoregressive decode for one batch group.

    out_ref : (BG, num_steps*F) lane-dense output slab (128 lanes for T=8, F=16).
    wrec_ref: (D+H, 4H) bf16 fused recurrent weight, rows [W_fold ; wh],
              columns [rz | gi_n | gh_n].
    """
    B = h0_ref.shape[0]
    H = b_hn_ref.shape[1]
    D = w2_ref.shape[0]
    F = w2_ref.shape[1]
    num_steps = out_ref.shape[1] // F

    # Weights loaded once; stay resident (bf16) across the unrolled loop.
    wrec = wrec_ref[...]          # (D+H, 4H)
    w1 = w1_ref[...]              # (H, D)
    w2 = w2_ref[...]              # (D, F)

    # Hoist bias broadcasts out of the loop.
    b_rz0 = jnp.broadcast_to(b_rz0_ref[...], (B, 2 * H))
    b_rz1 = jnp.broadcast_to(b_rz1_ref[...], (B, 2 * H))
    b_n0 = jnp.broadcast_to(b_n0_ref[...], (B, H))
    b_n1 = jnp.broadcast_to(b_n1_ref[...], (B, H))
    b_hn = jnp.broadcast_to(b_hn_ref[...], (B, H))
    b1 = jnp.broadcast_to(b1_ref[...], (B, D))
    b2 = jnp.broadcast_to(b2_ref[...], (B, F))

    def mm(a, b):
        # bf16 operands, f32 accumulation (single MXU pass on v5e/v6e/v7x).
        return jnp.dot(a.astype(jnp.bfloat16), b, preferred_element_type=jnp.float32)

    h = h0_ref[...]                                  # f32 (B, H)
    mid = jnp.zeros((B, D), dtype=jnp.float32)       # step-0 "mid": x0 == 0
    ys = []

    # Fully unrolled decode loop (small static trip count): cross-step LLO
    # visibility, all offsets static.
    # TODO(synk): for num_steps >~ 32 switch to lax.fori_loop(..., unroll=k) carrying
    # (mid, h), with pl.multiple_of on the store offset.
    # TODO(synk): advanced — hold wrec/w1 weight-stationary in the MXUs via
    # pltpu.matmul_push_rhs/acc_lhs/pop once a bundle dump shows weight pushes
    # on the critical path.
    for t in range(num_steps):
        first = t == 0
        # One fused matmul for every gate pre-activation:
        # [mid | h] @ [[W_rz, W_n, 0], [wh_rz, 0, wh_n]] -> [rz_pre | gi_n | gh_n].
        g = mm(jnp.concatenate([mid, h], axis=1), wrec)           # (B, 4H)
        rz = jax.nn.sigmoid(g[:, :2 * H] + (b_rz0 if first else b_rz1))
        r = rz[:, :H]
        z = rz[:, H:]
        # TODO(synk): inspect Mosaic dump for cross-lane realignment of the 32-lane
        # slabs; reorder fused gate columns if a vrot lands on the r->n->h sub-chain.
        n = jnp.tanh(g[:, 2 * H:3 * H] + (b_n0 if first else b_n1)
                     + r * (g[:, 3 * H:] + b_hn))
        h = n + z * (h - n)                                       # == (1-z)*n + z*h
        mid = jnp.tanh(mm(h, w1) + b1)
        # y_t only feeds the output buffer; the recurrence consumes `mid` directly
        # (w2 is folded into wrec), so this matmul is off the loop-carried chain.
        ys.append(mm(mid, w2) + b2)

    # Single full-width (128-lane) unmasked store.
    out_ref[...] = jnp.concatenate(ys, axis=1)


def gru_decode(hidden_state, params, num_steps, *, batch_group=8):
    """hidden_state: (1, B, H) like PyTorch nn.GRU h0; returns (num_steps, B, F)."""
    h0 = hidden_state[0]                                  # (B, H)
    B, H = h0.shape
    F = params["w_ir"].shape[0]
    D = params["w1"].shape[1]
    hi = jax.lax.Precision.HIGHEST

    # ---- one-time weight fusion / folding (outside the kernel) -----------------
    wi = jnp.concatenate([params["w_ir"], params["w_iz"], params["w_in"]], axis=1)   # (F, 3H)
    wh = jnp.concatenate([params["w_hr"], params["w_hz"], params["w_hn"]], axis=1)   # (H, 3H)
    w2 = params["w2"]                                                                # (D, F)
    b2 = params["b2"]                                                                # (1, F)

    # Fold output head into the recurrence: x_{t+1} @ wi == mid_t @ (w2@wi) + b2@wi.
    w_fold = jnp.dot(w2, wi, precision=hi)                                           # (D, 3H)
    b_fold = jnp.dot(b2, wi, precision=hi)                                           # (1, 3H)

    # Fused recurrent weight: rows [mid ; h], columns [rz | gi_n | gh_n].
    top = jnp.concatenate([w_fold[:, :2 * H], w_fold[:, 2 * H:],
                           jnp.zeros((D, H), jnp.float32)], axis=1)                  # (D, 4H)
    bot = jnp.concatenate([wh[:, :2 * H], jnp.zeros((H, H), jnp.float32),
                           wh[:, 2 * H:]], axis=1)                                   # (H, 4H)
    wrec = jnp.concatenate([top, bot], axis=0).astype(jnp.bfloat16)                  # (D+H, 4H)

    # Biases (f32). Step 0 has x0 == 0, so its biases exclude the b_fold term.
    b_rz0 = jnp.concatenate([params["b_ir"] + params["b_hr"],
                             params["b_iz"] + params["b_hz"]], axis=1)               # (1, 2H)
    b_rz1 = b_rz0 + b_fold[:, :2 * H]
    b_n0 = params["b_in"]
    b_n1 = params["b_in"] + b_fold[:, 2 * H:]
    b_hn = params["b_hn"]

    w1 = params["w1"].astype(jnp.bfloat16)
    w2b = w2.astype(jnp.bfloat16)
    b1 = params["b1"]

    # ---- grid over batch groups ("parallel" => both TCs on v7x) ----------------
    bg = min(batch_group, B)
    assert B % bg == 0, "batch must be a multiple of the batch group size"
    grid = (B // bg,)

    const = lambda g: (0, 0)       # weights / biases: same block every grid step
    batched = lambda g: (g, 0)     # h0 / out: one batch group per grid step

    out_flat = pl.pallas_call(
        gru_decoder_kernel,
        out_shape=jax.ShapeDtypeStruct((B, num_steps * F), jnp.float32),
        grid_spec=pltpu.PrefetchScalarGridSpec(
            num_scalar_prefetch=0,
            grid=grid,
            in_specs=[
                pl.BlockSpec((bg, H), batched),            # h0
                pl.BlockSpec(wrec.shape, const),           # fused recurrent weight
                pl.BlockSpec((1, 2 * H), const),           # b_rz0
                pl.BlockSpec((1, 2 * H), const),           # b_rz1
                pl.BlockSpec((1, H), const),               # b_n0
                pl.BlockSpec((1, H), const),               # b_n1
                pl.BlockSpec((1, H), const),               # b_hn
                pl.BlockSpec((H, D), const),               # w1
                pl.BlockSpec((1, D), const),               # b1
                pl.BlockSpec((D, F), const),               # w2
                pl.BlockSpec((1, F), const),               # b2
            ],
            out_specs=pl.BlockSpec((bg, num_steps * F), batched),
        ),
        compiler_params=pltpu.CompilerParams(
            dimension_semantics=("parallel",)),
    )(h0, wrec, b_rz0, b_rz1, b_n0, b_n1, b_hn, w1, b1, w2b, b2)

    # (B, T*F) -> (T, B, F): layout plumbing done by XLA in the wrapper.
    return out_flat.reshape(B, num_steps, F).transpose(1, 0, 2)


def gru_decode_ref(hidden_state, p, num_steps):
    """Pure-JAX f32 reference with identical semantics (for verification)."""
    h = hidden_state[0]
    B = h.shape[0]
    F = p["w_ir"].shape[0]
    x = jnp.zeros((B, F), jnp.float32)
    outs = []
    for _ in range(num_steps):
        r = jax.nn.sigmoid(x @ p["w_ir"] + p["b_ir"] + h @ p["w_hr"] + p["b_hr"])
        z = jax.nn.sigmoid(x @ p["w_iz"] + p["b_iz"] + h @ p["w_hz"] + p["b_hz"])
        n = jnp.tanh(x @ p["w_in"] + p["b_in"] + r * (h @ p["w_hn"] + p["b_hn"]))
        h = (1.0 - z) * n + z * h
        y = jnp.tanh(h @ p["w1"] + p["b1"]) @ p["w2"] + p["b2"]
        outs.append(y)
        x = y
    return jnp.stack(outs, axis=0)


def init_params(key, frame_size, hidden_units, decode_hu):
    """Deterministic init mirroring PyTorch default ranges (uniform +-1/sqrt(fan))."""
    ks = jax.random.split(key, 16)
    kg = 1.0 / jnp.sqrt(hidden_units)

    def u(k, shape, bound):
        return jax.random.uniform(k, shape, jnp.float32, -bound, bound)

    return {
        # GRU input-to-hidden weights, stored transposed: (F, H)
        "w_ir": u(ks[0], (frame_size, hidden_units), kg),
        "w_iz": u(ks[1], (frame_size, hidden_units), kg),
        "w_in": u(ks[2], (frame_size, hidden_units), kg),
        # GRU hidden-to-hidden weights, transposed: (H, H)
        "w_hr": u(ks[3], (hidden_units, hidden_units), kg),
        "w_hz": u(ks[4], (hidden_units, hidden_units), kg),
        "w_hn": u(ks[5], (hidden_units, hidden_units), kg),
        # GRU biases (2D (1, H) for clean broadcasting on TPU)
        "b_ir": u(ks[6], (1, hidden_units), kg),
        "b_iz": u(ks[7], (1, hidden_units), kg),
        "b_in": u(ks[8], (1, hidden_units), kg),
        "b_hr": u(ks[9], (1, hidden_units), kg),
        "b_hz": u(ks[10], (1, hidden_units), kg),
        "b_hn": u(ks[11], (1, hidden_units), kg),
        # decoder_linear: (H, decode_hu) transposed, bias (1, decode_hu)
        "w1": u(ks[12], (hidden_units, decode_hu), kg),
        "b1": u(ks[13], (1, decode_hu), kg),
        # decoder_linear2: (decode_hu, F) transposed, bias (1, F)
        "w2": u(ks[14], (decode_hu, frame_size), 1.0 / jnp.sqrt(decode_hu)),
        "b2": u(ks[15], (1, frame_size), 1.0 / jnp.sqrt(decode_hu)),
    }


if __name__ == "__main__":
    frame_size = 16
    hidden_units = 32
    decode_hu = 20
    batch = 16          # fills vreg sublanes (groups of 8) and exercises the grid
    num_steps = 8

    key = jax.random.PRNGKey(0)
    k_params, k_h = jax.random.split(key)
    params = init_params(k_params, frame_size, hidden_units, decode_hu)

    # encoded_states / hidden_state: (num_layers=1, B, H), like PyTorch nn.GRU h0
    hidden_state = jax.random.normal(k_h, (1, batch, hidden_units), jnp.float32)

    out = gru_decode(hidden_state, params, num_steps)
    out = jax.block_until_ready(out)

    ref = gru_decode_ref(hidden_state, params, num_steps)
    assert out.shape == (num_steps, batch, frame_size)
    # bf16 MXU operands => relaxed tolerance vs the f32 reference.
    err = float(jnp.max(jnp.abs(out - ref)))
    assert err < 5e-2, f"mismatch vs JAX reference (max abs err {err})"

    print("KERNEL_OK")
</pallas_src>

<mosaic_0001>
module attributes {stable_mosaic.version = 11 : i64} {
  func.func @gru_decoder_kernel(%arg0: i32, %arg1: memref<8x32xf32, #tpu.memory_space<vmem>>, %arg2: memref<52x128xbf16, #tpu.memory_space<vmem>>, %arg3: memref<1x64xf32, #tpu.memory_space<vmem>>, %arg4: memref<1x64xf32, #tpu.memory_space<vmem>>, %arg5: memref<1x32xf32, #tpu.memory_space<vmem>>, %arg6: memref<1x32xf32, #tpu.memory_space<vmem>>, %arg7: memref<1x32xf32, #tpu.memory_space<vmem>>, %arg8: memref<32x20xbf16, #tpu.memory_space<vmem>>, %arg9: memref<1x20xf32, #tpu.memory_space<vmem>>, %arg10: memref<20x16xbf16, #tpu.memory_space<vmem>>, %arg11: memref<1x16xf32, #tpu.memory_space<vmem>>, %arg12: memref<8x128xf32, #tpu.memory_space<vmem>>) attributes {dimension_semantics = [#tpu.dimension_semantics<parallel>], iteration_bounds = array<i64: 2>, scalar_prefetch = 0 : i64, scratch_operands = 0 : i64, tpu.core_type = #tpu.core_type<tc>, window_params = [{transform_indices = @transform_0, window_bounds = array<i64: 8, 32>}, {pipeline_mode = #tpu.pipeline_mode<synchronous>, transform_indices = @transform_1, window_bounds = array<i64: 52, 128>}, {pipeline_mode = #tpu.pipeline_mode<synchronous>, transform_indices = @transform_2, window_bounds = array<i64: 1, 64>}, {pipeline_mode = #tpu.pipeline_mode<synchronous>, transform_indices = @transform_3, window_bounds = array<i64: 1, 64>}, {pipeline_mode = #tpu.pipeline_mode<synchronous>, transform_indices = @transform_4, window_bounds = array<i64: 1, 32>}, {pipeline_mode = #tpu.pipeline_mode<synchronous>, transform_indices = @transform_5, window_bounds = array<i64: 1, 32>}, {pipeline_mode = #tpu.pipeline_mode<synchronous>, transform_indices = @transform_6, window_bounds = array<i64: 1, 32>}, {pipeline_mode = #tpu.pipeline_mode<synchronous>, transform_indices = @transform_7, window_bounds = array<i64: 32, 20>}, {pipeline_mode = #tpu.pipeline_mode<synchronous>, transform_indices = @transform_8, window_bounds = array<i64: 1, 20>}, {pipeline_mode = #tpu.pipeline_mode<synchronous>, transform_indices = @transform_9, window_bounds = array<i64: 20, 16>}, {pipeline_mode = #tpu.pipeline_mode<synchronous>, transform_indices = @transform_10, window_bounds = array<i64: 1, 16>}, {transform_indices = @transform_11, window_bounds = array<i64: 8, 128>}]} {
    %c0 = arith.constant 0 : index
    %c0_0 = arith.constant 0 : index
    %0 = vector.load %arg2[%c0, %c0_0] : memref<52x128xbf16, #tpu.memory_space<vmem>>, vector<52x128xbf16>
    %c0_1 = arith.constant 0 : index
    %c0_2 = arith.constant 0 : index
    %1 = vector.load %arg8[%c0_1, %c0_2] : memref<32x20xbf16, #tpu.memory_space<vmem>>, vector<32x20xbf16>
    %c0_3 = arith.constant 0 : index
    %c0_4 = arith.constant 0 : index
    %2 = vector.load %arg10[%c0_3, %c0_4] : memref<20x16xbf16, #tpu.memory_space<vmem>>, vector<20x16xbf16>
    %c0_5 = arith.constant 0 : index
    %c0_6 = arith.constant 0 : index
    %3 = vector.load %arg3[%c0_5, %c0_6] : memref<1x64xf32, #tpu.memory_space<vmem>>, vector<1x64xf32>
    %4 = vector.shape_cast %3 : vector<1x64xf32> to vector<1x64xf32>
    %5 = vector.broadcast %4 : vector<1x64xf32> to vector<8x64xf32>
    %c0_7 = arith.constant 0 : index
    %c0_8 = arith.constant 0 : index
    %6 = vector.load %arg4[%c0_7, %c0_8] : memref<1x64xf32, #tpu.memory_space<vmem>>, vector<1x64xf32>
    %7 = vector.shape_cast %6 : vector<1x64xf32> to vector<1x64xf32>
    %8 = vector.broadcast %7 : vector<1x64xf32> to vector<8x64xf32>
    %c0_9 = arith.constant 0 : index
    %c0_10 = arith.constant 0 : index
    %9 = vector.load %arg5[%c0_9, %c0_10] : memref<1x32xf32, #tpu.memory_space<vmem>>, vector<1x32xf32>
    %10 = vector.shape_cast %9 : vector<1x32xf32> to vector<1x32xf32>
    %11 = vector.broadcast %10 : vector<1x32xf32> to vector<8x32xf32>
    %c0_11 = arith.constant 0 : index
    %c0_12 = arith.constant 0 : index
    %12 = vector.load %arg6[%c0_11, %c0_12] : memref<1x32xf32, #tpu.memory_space<vmem>>, vector<1x32xf32>
    %13 = vector.shape_cast %12 : vector<1x32xf32> to vector<1x32xf32>
    %14 = vector.broadcast %13 : vector<1x32xf32> to vector<8x32xf32>
    %c0_13 = arith.constant 0 : index
    %c0_14 = arith.constant 0 : index
    %15 = vector.load %arg7[%c0_13, %c0_14] : memref<1x32xf32, #tpu.memory_space<vmem>>, vector<1x32xf32>
    %16 = vector.shape_cast %15 : vector<1x32xf32> to vector<1x32xf32>
    %17 = vector.broadcast %16 : vector<1x32xf32> to vector<8x32xf32>
    %c0_15 = arith.constant 0 : index
    %c0_16 = arith.constant 0 : index
    %18 = vector.load %arg9[%c0_15, %c0_16] : memref<1x20xf32, #tpu.memory_space<vmem>>, vector<1x20xf32>
    %19 = vector.shape_cast %18 : vector<1x20xf32> to vector<1x20xf32>
    %20 = vector.broadcast %19 : vector<1x20xf32> to vector<8x20xf32>
    %c0_17 = arith.constant 0 : index
    %c0_18 = arith.constant 0 : index
    %21 = vector.load %arg11[%c0_17, %c0_18] : memref<1x16xf32, #tpu.memory_space<vmem>>, vector<1x16xf32>
    %22 = vector.shape_cast %21 : vector<1x16xf32> to vector<1x16xf32>
    %23 = vector.broadcast %22 : vector<1x16xf32> to vector<8x16xf32>
    %c0_19 = arith.constant 0 : index
    %c0_20 = arith.constant 0 : index
    %24 = vector.load %arg1[%c0_19, %c0_20] : memref<8x32xf32, #tpu.memory_space<vmem>>, vector<8x32xf32>
    %cst = arith.constant 0.000000e+00 : f32
    %25 = vector.broadcast %cst : f32 to vector<8x20xf32>
    %26 = tpu.concatenate %25, %24 in 1 : vector<8x20xf32>, vector<8x32xf32> -> vector<8x52xf32>
    %27 = arith.truncf %26 : vector<8x52xf32> to vector<8x52xbf16>
    %cst_21 = arith.constant dense<0.000000e+00> : vector<8x128xf32>
    %28 = tpu.matmul %27, %0, %cst_21 {dimension_numbers = #tpu.dot_dimension_numbers<[1], [0], [0], [1], [0, 0, 1, 1], [], []>} : vector<8x52xbf16>, vector<52x128xbf16>, vector<8x128xf32> -> vector<8x128xf32>
    %29 = vector.extract_strided_slice %28 {offsets = [0, 0], sizes = [8, 64], strides = [1, 1]} : vector<8x128xf32> to vector<8x64xf32>
    %30 = arith.addf %29, %5 : vector<8x64xf32>
    %31 = arith.negf %30 : vector<8x64xf32>
    %32 = math.exp %31 : vector<8x64xf32>
    %cst_22 = arith.constant 1.000000e+00 : f32
    %33 = vector.broadcast %cst_22 : f32 to vector<8x64xf32>
    %34 = arith.addf %33, %32 : vector<8x64xf32>
    %35 = arith.divf %33, %34 : vector<8x64xf32>
    %36 = vector.extract_strided_slice %35 {offsets = [0, 0], sizes = [8, 32], strides = [1, 1]} : vector<8x64xf32> to vector<8x32xf32>
    %37 = vector.extract_strided_slice %35 {offsets = [0, 32], sizes = [8, 32], strides = [1, 1]} : vector<8x64xf32> to vector<8x32xf32>
    %38 = vector.extract_strided_slice %28 {offsets = [0, 64], sizes = [8, 32], strides = [1, 1]} : vector<8x128xf32> to vector<8x32xf32>
    %39 = arith.addf %38, %11 : vector<8x32xf32>
    %40 = vector.extract_strided_slice %28 {offsets = [0, 96], sizes = [8, 32], strides = [1, 1]} : vector<8x128xf32> to vector<8x32xf32>
    %41 = arith.addf %40, %17 : vector<8x32xf32>
    %42 = arith.mulf %36, %41 : vector<8x32xf32>
    %43 = arith.addf %39, %42 : vector<8x32xf32>
    %44 = math.tanh %43 : vector<8x32xf32>
    %45 = arith.subf %24, %44 : vector<8x32xf32>
    %46 = arith.mulf %37, %45 : vector<8x32xf32>
    %47 = arith.addf %44, %46 : vector<8x32xf32>
    %48 = arith.truncf %47 : vector<8x32xf32> to vector<8x32xbf16>
    %cst_23 = arith.constant dense<0.000000e+00> : vector<8x20xf32>
    %49 = tpu.matmul %48, %1, %cst_23 {dimension_numbers = #tpu.dot_dimension_numbers<[1], [0], [0], [1], [0, 0, 1, 1], [], []>} : vector<8x32xbf16>, vector<32x20xbf16>, vector<8x20xf32> -> vector<8x20xf32>
    %50 = arith.addf %49, %20 : vector<8x20xf32>
    %51 = math.tanh %50 : vector<8x20xf32>
    %52 = arith.truncf %51 : vector<8x20xf32> to vector<8x20xbf16>
    %cst_24 = arith.constant dense<0.000000e+00> : vector<8x16xf32>
    %53 = tpu.matmul %52, %2, %cst_24 {dimension_numbers = #tpu.dot_dimension_numbers<[1], [0], [0], [1], [0, 0, 1, 1], [], []>} : vector<8x20xbf16>, vector<20x16xbf16>, vector<8x16xf32> -> vector<8x16xf32>
    %54 = arith.addf %53, %23 : vector<8x16xf32>
    %55 = tpu.concatenate %51, %47 in 1 : vector<8x20xf32>, vector<8x32xf32> -> vector<8x52xf32>
    %56 = arith.truncf %55 : vector<8x52xf32> to vector<8x52xbf16>
    %cst_25 = arith.constant dense<0.000000e+00> : vector<8x128xf32>
    %57 = tpu.matmul %56, %0, %cst_25 {dimension_numbers = #tpu.dot_dimension_numbers<[1], [0], [0], [1], [0, 0, 1, 1], [], []>} : vector<8x52xbf16>, vector<52x128xbf16>, vector<8x128xf32> -> vector<8x128xf32>
    %58 = vector.extract_strided_slice %57 {offsets = [0, 0], sizes = [8, 64], strides = [1, 1]} : vector<8x128xf32> to vector<8x64xf32>
    %59 = arith.addf %58, %8 : vector<8x64xf32>
    %60 = arith.negf %59 : vector<8x64xf32>
    %61 = math.exp %60 : vector<8x64xf32>
    %cst_26 = arith.constant 1.000000e+00 : f32
    %62 = vector.broadcast %cst_26 : f32 to vector<8x64xf32>
    %63 = arith.addf %62, %61 : vector<8x64xf32>
    %64 = arith.divf %62, %63 : vector<8x64xf32>
    %65 = vector.extract_strided_slice %64 {offsets = [0, 0], sizes = [8, 32], strides = [1, 1]} : vector<8x64xf32> to vector<8x32xf32>
    %66 = vector.extract_strided_slice %64 {offsets = [0, 32], sizes = [8, 32], strides = [1, 1]} : vector<8x64xf32> to vector<8x32xf32>
    %67 = vector.extract_strided_slice %57 {offsets = [0, 64], sizes = [8, 32], strides = [1, 1]} : vector<8x128xf32> to vector<8x32xf32>
    %68 = arith.addf %67, %14 : vector<8x32xf32>
    %69 = vector.extract_strided_slice %57 {offsets = [0, 96], sizes = [8, 32], strides = [1, 1]} : vector<8x128xf32> to vector<8x32xf32>
    %70 = arith.addf %69, %17 : vector<8x32xf32>
    %71 = arith.mulf %65, %70 : vector<8x32xf32>
    %72 = arith.addf %68, %71 : vector<8x32xf32>
    %73 = math.tanh %72 : vector<8x32xf32>
    %74 = arith.subf %47, %73 : vector<8x32xf32>
    %75 = arith.mulf %66, %74 : vector<8x32xf32>
    %76 = arith.addf %73, %75 : vector<8x32xf32>
    %77 = arith.truncf %76 : vector<8x32xf32> to vector<8x32xbf16>
    %cst_27 = arith.constant dense<0.000000e+00> : vector<8x20xf32>
    %78 = tpu.matmul %77, %1, %cst_27 {dimension_numbers = #tpu.dot_dimension_numbers<[1], [0], [0], [1], [0, 0, 1, 1], [], []>} : vector<8x32xbf16>, vector<32x20xbf16>, vector<8x20xf32> -> vector<8x20xf32>
    %79 = arith.addf %78, %20 : vector<8x20xf32>
    %80 = math.tanh %79 : vector<8x20xf32>
    %81 = arith.truncf %80 : vector<8x20xf32> to vector<8x20xbf16>
    %cst_28 = arith.constant dense<0.000000e+00> : vector<8x16xf32>
    %82 = tpu.matmul %81, %2, %cst_28 {dimension_numbers = #tpu.dot_dimension_numbers<[1], [0], [0], [1], [0, 0, 1, 1], [], []>} : vector<8x20xbf16>, vector<20x16xbf16>, vector<8x16xf32> -> vector<8x16xf32>
    %83 = arith.addf %82, %23 : vector<8x16xf32>
    %84 = tpu.concatenate %80, %76 in 1 : vector<8x20xf32>, vector<8x32xf32> -> vector<8x52xf32>
    %85 = arith.truncf %84 : vector<8x52xf32> to vector<8x52xbf16>
    %cst_29 = arith.constant dense<0.000000e+00> : vector<8x128xf32>
    %86 = tpu.matmul %85, %0, %cst_29 {dimension_numbers = #tpu.dot_dimension_numbers<[1], [0], [0], [1], [0, 0, 1, 1], [], []>} : vector<8x52xbf16>, vector<52x128xbf16>, vector<8x128xf32> -> vector<8x128xf32>
    %87 = vector.extract_strided_slice %86 {offsets = [0, 0], sizes = [8, 64], strides = [1, 1]} : vector<8x128xf32> to vector<8x64xf32>
    %88 = arith.addf %87, %8 : vector<8x64xf32>
    %89 = arith.negf %88 : vector<8x64xf32>
    %90 = math.exp %89 : vector<8x64xf32>
    %cst_30 = arith.constant 1.000000e+00 : f32
    %91 = vector.broadcast %cst_30 : f32 to vector<8x64xf32>
    %92 = arith.addf %91, %90 : vector<8x64xf32>
    %93 = arith.divf %91, %92 : vector<8x64xf32>
    %94 = vector.extract_strided_slice %93 {offsets = [0, 0], sizes = [8, 32], strides = [1, 1]} : vector<8x64xf32> to vector<8x32xf32>
    %95 = vector.extract_strided_slice %93 {offsets = [0, 32], sizes = [8, 32], strides = [1, 1]} : vector<8x64xf32> to vector<8x32xf32>
    %96 = vector.extract_strided_slice %86 {offsets = [0, 64], sizes = [8, 32], strides = [1, 1]} : vector<8x128xf32> to vector<8x32xf32>
    %97 = arith.addf %96, %14 : vector<8x32xf32>
    %98 = vector.extract_strided_slice %86 {offsets = [0, 96], sizes = [8, 32], strides = [1, 1]} : vector<8x128xf32> to vector<8x32xf32>
    %99 = arith.addf %98, %17 : vector<8x32xf32>
    %100 = arith.mulf %94, %99 : vector<8x32xf32>
    %101 = arith.addf %97, %100 : vector<8x32xf32>
    %102 = math.tanh %101 : vector<8x32xf32>
    %103 = arith.subf %76, %102 : vector<8x32xf32>
    %104 = arith.mulf %95, %103 : vector<8x32xf32>
    %105 = arith.addf %102, %104 : vector<8x32xf32>
    %106 = arith.truncf %105 : vector<8x32xf32> to vector<8x32xbf16>
    %cst_31 = arith.constant dense<0.000000e+00> : vector<8x20xf32>
    %107 = tpu.matmul %106, %1, %cst_31 {dimension_numbers = #tpu.dot_dimension_numbers<[1], [0], [0], [1], [0, 0, 1, 1], [], []>} : vector<8x32xbf16>, vector<32x20xbf16>, vector<8x20xf32> -> vector<8x20xf32>
    %108 = arith.addf %107, %20 : vector<8x20xf32>
    %109 = math.tanh %108 : vector<8x20xf32>
    %110 = arith.truncf %109 : vector<8x20xf32> to vector<8x20xbf16>
    %cst_32 = arith.constant dense<0.000000e+00> : vector<8x16xf32>
    %111 = tpu.matmul %110, %2, %cst_32 {dimension_numbers = #tpu.dot_dimension_numbers<[1], [0], [0], [1], [0, 0, 1, 1], [], []>} : vector<8x20xbf16>, vector<20x16xbf16>, vector<8x16xf32> -> vector<8x16xf32>
    %112 = arith.addf %111, %23 : vector<8x16xf32>
    %113 = tpu.concatenate %109, %105 in 1 : vector<8x20xf32>, vector<8x32xf32> -> vector<8x52xf32>
    %114 = arith.truncf %113 : vector<8x52xf32> to vector<8x52xbf16>
    %cst_33 = arith.constant dense<0.000000e+00> : vector<8x128xf32>
    %115 = tpu.matmul %114, %0, %cst_33 {dimension_numbers = #tpu.dot_dimension_numbers<[1], [0], [0], [1], [0, 0, 1, 1], [], []>} : vector<8x52xbf16>, vector<52x128xbf16>, vector<8x128xf32> -> vector<8x128xf32>
    %116 = vector.extract_strided_slice %115 {offsets = [0, 0], sizes = [8, 64], strides = [1, 1]} : vector<8x128xf32> to vector<8x64xf32>
    %117 = arith.addf %116, %8 : vector<8x64xf32>
    %118 = arith.negf %117 : vector<8x64xf32>
    %119 = math.exp %118 : vector<8x64xf32>
    %cst_34 = arith.constant 1.000000e+00 : f32
    %120 = vector.broadcast %cst_34 : f32 to vector<8x64xf32>
    %121 = arith.addf %120, %119 : vector<8x64xf32>
    %122 = arith.divf %120, %121 : vector<8x64xf32>
    %123 = vector.extract_strided_slice %122 {offsets = [0, 0], sizes = [8, 32], strides = [1, 1]} : vector<8x64xf32> to vector<8x32xf32>
    %124 = vector.extract_strided_slice %122 {offsets = [0, 32], sizes = [8, 32], strides = [1, 1]} : vector<8x64xf32> to vector<8x32xf32>
    %125 = vector.extract_strided_slice %115 {offsets = [0, 64], sizes = [8, 32], strides = [1, 1]} : vector<8x128xf32> to vector<8x32xf32>
    %126 = arith.addf %125, %14 : vector<8x32xf32>
    %127 = vector.extract_strided_slice %115 {offsets = [0, 96], sizes = [8, 32], strides = [1, 1]} : vector<8x128xf32> to vector<8x32xf32>
    %128 = arith.addf %127, %17 : vector<8x32xf32>
    %129 = arith.mulf %123, %128 : vector<8x32xf32>
    %130 = arith.addf %126, %129 : vector<8x32xf32>
    %131 = math.tanh %130 : vector<8x32xf32>
    %132 = arith.subf %105, %131 : vector<8x32xf32>
    %133 = arith.mulf %124, %132 : vector<8x32xf32>
    %134 = arith.addf %131, %133 : vector<8x32xf32>
    %135 = arith.truncf %134 : vector<8x32xf32> to vector<8x32xbf16>
    %cst_35 = arith.constant dense<0.000000e+00> : vector<8x20xf32>
    %136 = tpu.matmul %135, %1, %cst_35 {dimension_numbers = #tpu.dot_dimension_numbers<[1], [0], [0], [1], [0, 0, 1, 1], [], []>} : vector<8x32xbf16>, vector<32x20xbf16>, vector<8x20xf32> -> vector<8x20xf32>
    %137 = arith.addf %136, %20 : vector<8x20xf32>
    %138 = math.tanh %137 : vector<8x20xf32>
    %139 = arith.truncf %138 : vector<8x20xf32> to vector<8x20xbf16>
    %cst_36 = arith.constant dense<0.000000e+00> : vector<8x16xf32>
    %140 = tpu.matmul %139, %2, %cst_36 {dimension_numbers = #tpu.dot_dimension_numbers<[1], [0], [0], [1], [0, 0, 1, 1], [], []>} : vector<8x20xbf16>, vector<20x16xbf16>, vector<8x16xf32> -> vector<8x16xf32>
    %141 = arith.addf %140, %23 : vector<8x16xf32>
    %142 = tpu.concatenate %138, %134 in 1 : vector<8x20xf32>, vector<8x32xf32> -> vector<8x52xf32>
    %143 = arith.truncf %142 : vector<8x52xf32> to vector<8x52xbf16>
    %cst_37 = arith.constant dense<0.000000e+00> : vector<8x128xf32>
    %144 = tpu.matmul %143, %0, %cst_37 {dimension_numbers = #tpu.dot_dimension_numbers<[1], [0], [0], [1], [0, 0, 1, 1], [], []>} : vector<8x52xbf16>, vector<52x128xbf16>, vector<8x128xf32> -> vector<8x128xf32>
    %145 = vector.extract_strided_slice %144 {offsets = [0, 0], sizes = [8, 64], strides = [1, 1]} : vector<8x128xf32> to vector<8x64xf32>
    %146 = arith.addf %145, %8 : vector<8x64xf32>
    %147 = arith.negf %146 : vector<8x64xf32>
    %148 = math.exp %147 : vector<8x64xf32>
    %cst_38 = arith.constant 1.000000e+00 : f32
    %149 = vector.broadcast %cst_38 : f32 to vector<8x64xf32>
    %150 = arith.addf %149, %148 : vector<8x64xf32>
    %151 = arith.divf %149, %150 : vector<8x64xf32>
    %152 = vector.extract_strided_slice %151 {offsets = [0, 0], sizes = [8, 32], strides = [1, 1]} : vector<8x64xf32> to vector<8x32xf32>
    %153 = vector.extract_strided_slice %151 {offsets = [0, 32], sizes = [8, 32], strides = [1, 1]} : vector<8x64xf32> to vector<8x32xf32>
    %154 = vector.extract_strided_slice %144 {offsets = [0, 64], sizes = [8, 32], strides = [1, 1]} : vector<8x128xf32> to vector<8x32xf32>
    %155 = arith.addf %154, %14 : vector<8x32xf32>
    %156 = vector.extract_strided_slice %144 {offsets = [0, 96], sizes = [8, 32], strides = [1, 1]} : vector<8x128xf32> to vector<8x32xf32>
    %157 = arith.addf %156, %17 : vector<8x32xf32>
    %158 = arith.mulf %152, %157 : vector<8x32xf32>
    %159 = arith.addf %155, %158 : vector<8x32xf32>
    %160 = math.tanh %159 : vector<8x32xf32>
    %161 = arith.subf %134, %160 : vector<8x32xf32>
    %162 = arith.mulf %153, %161 : vector<8x32xf32>
    %163 = arith.addf %160, %162 : vector<8x32xf32>
    %164 = arith.truncf %163 : vector<8x32xf32> to vector<8x32xbf16>
    %cst_39 = arith.constant dense<0.000000e+00> : vector<8x20xf32>
    %165 = tpu.matmul %164, %1, %cst_39 {dimension_numbers = #tpu.dot_dimension_numbers<[1], [0], [0], [1], [0, 0, 1, 1], [], []>} : vector<8x32xbf16>, vector<32x20xbf16>, vector<8x20xf32> -> vector<8x20xf32>
    %166 = arith.addf %165, %20 : vector<8x20xf32>
    %167 = math.tanh %166 : vector<8x20xf32>
    %168 = arith.truncf %167 : vector<8x20xf32> to vector<8x20xbf16>
    %cst_40 = arith.constant dense<0.000000e+00> : vector<8x16xf32>
    %169 = tpu.matmul %168, %2, %cst_40 {dimension_numbers = #tpu.dot_dimension_numbers<[1], [0], [0], [1], [0, 0, 1, 1], [], []>} : vector<8x20xbf16>, vector<20x16xbf16>, vector<8x16xf32> -> vector<8x16xf32>
    %170 = arith.addf %169, %23 : vector<8x16xf32>
    %171 = tpu.concatenate %167, %163 in 1 : vector<8x20xf32>, vector<8x32xf32> -> vector<8x52xf32>
    %172 = arith.truncf %171 : vector<8x52xf32> to vector<8x52xbf16>
    %cst_41 = arith.constant dense<0.000000e+00> : vector<8x128xf32>
    %173 = tpu.matmul %172, %0, %cst_41 {dimension_numbers = #tpu.dot_dimension_numbers<[1], [0], [0], [1], [0, 0, 1, 1], [], []>} : vector<8x52xbf16>, vector<52x128xbf16>, vector<8x128xf32> -> vector<8x128xf32>
    %174 = vector.extract_strided_slice %173 {offsets = [0, 0], sizes = [8, 64], strides = [1, 1]} : vector<8x128xf32> to vector<8x64xf32>
    %175 = arith.addf %174, %8 : vector<8x64xf32>
    %176 = arith.negf %175 : vector<8x64xf32>
    %177 = math.exp %176 : vector<8x64xf32>
    %cst_42 = arith.constant 1.000000e+00 : f32
    %178 = vector.broadcast %cst_42 : f32 to vector<8x64xf32>
    %179 = arith.addf %178, %177 : vector<8x64xf32>
    %180 = arith.divf %178, %179 : vector<8x64xf32>
    %181 = vector.extract_strided_slice %180 {offsets = [0, 0], sizes = [8, 32], strides = [1, 1]} : vector<8x64xf32> to vector<8x32xf32>
    %182 = vector.extract_strided_slice %180 {offsets = [0, 32], sizes = [8, 32], strides = [1, 1]} : vector<8x64xf32> to vector<8x32xf32>
    %183 = vector.extract_strided_slice %173 {offsets = [0, 64], sizes = [8, 32], strides = [1, 1]} : vector<8x128xf32> to vector<8x32xf32>
    %184 = arith.addf %183, %14 : vector<8x32xf32>
    %185 = vector.extract_strided_slice %173 {offsets = [0, 96], sizes = [8, 32], strides = [1, 1]} : vector<8x128xf32> to vector<8x32xf32>
    %186 = arith.addf %185, %17 : vector<8x32xf32>
    %187 = arith.mulf %181, %186 : vector<8x32xf32>
    %188 = arith.addf %184, %187 : vector<8x32xf32>
    %189 = math.tanh %188 : vector<8x32xf32>
    %190 = arith.subf %163, %189 : vector<8x32xf32>
    %191 = arith.mulf %182, %190 : vector<8x32xf32>
    %192 = arith.addf %189, %191 : vector<8x32xf32>
    %193 = arith.truncf %192 : vector<8x32xf32> to vector<8x32xbf16>
    %cst_43 = arith.constant dense<0.000000e+00> : vector<8x20xf32>
    %194 = tpu.matmul %193, %1, %cst_43 {dimension_numbers = #tpu.dot_dimension_numbers<[1], [0], [0], [1], [0, 0, 1, 1], [], []>} : vector<8x32xbf16>, vector<32x20xbf16>, vector<8x20xf32> -> vector<8x20xf32>
    %195 = arith.addf %194, %20 : vector<8x20xf32>
    %196 = math.tanh %195 : vector<8x20xf32>
    %197 = arith.truncf %196 : vector<8x20xf32> to vector<8x20xbf16>
    %cst_44 = arith.constant dense<0.000000e+00> : vector<8x16xf32>
    %198 = tpu.matmul %197, %2, %cst_44 {dimension_numbers = #tpu.dot_dimension_numbers<[1], [0], [0], [1], [0, 0, 1, 1], [], []>} : vector<8x20xbf16>, vector<20x16xbf16>, vector<8x16xf32> -> vector<8x16xf32>
    %199 = arith.addf %198, %23 : vector<8x16xf32>
    %200 = tpu.concatenate %196, %192 in 1 : vector<8x20xf32>, vector<8x32xf32> -> vector<8x52xf32>
    %201 = arith.truncf %200 : vector<8x52xf32> to vector<8x52xbf16>
    %cst_45 = arith.constant dense<0.000000e+00> : vector<8x128xf32>
    %202 = tpu.matmul %201, %0, %cst_45 {dimension_numbers = #tpu.dot_dimension_numbers<[1], [0], [0], [1], [0, 0, 1, 1], [], []>} : vector<8x52xbf16>, vector<52x128xbf16>, vector<8x128xf32> -> vector<8x128xf32>
    %203 = vector.extract_strided_slice %202 {offsets = [0, 0], sizes = [8, 64], strides = [1, 1]} : vector<8x128xf32> to vector<8x64xf32>
    %204 = arith.addf %203, %8 : vector<8x64xf32>
    %205 = arith.negf %204 : vector<8x64xf32>
    %206 = math.exp %205 : vector<8x64xf32>
    %cst_46 = arith.constant 1.000000e+00 : f32
    %207 = vector.broadcast %cst_46 : f32 to vector<8x64xf32>
    %208 = arith.addf %207, %206 : vector<8x64xf32>
    %209 = arith.divf %207, %208 : vector<8x64xf32>
    %210 = vector.extract_strided_slice %209 {offsets = [0, 0], sizes = [8, 32], strides = [1, 1]} : vector<8x64xf32> to vector<8x32xf32>
    %211 = vector.extract_strided_slice %209 {offsets = [0, 32], sizes = [8, 32], strides = [1, 1]} : vector<8x64xf32> to vector<8x32xf32>
    %212 = vector.extract_strided_slice %202 {offsets = [0, 64], sizes = [8, 32], strides = [1, 1]} : vector<8x128xf32> to vector<8x32xf32>
    %213 = arith.addf %212, %14 : vector<8x32xf32>
    %214 = vector.extract_strided_slice %202 {offsets = [0, 96], sizes = [8, 32], strides = [1, 1]} : vector<8x128xf32> to vector<8x32xf32>
    %215 = arith.addf %214, %17 : vector<8x32xf32>
    %216 = arith.mulf %210, %215 : vector<8x32xf32>
    %217 = arith.addf %213, %216 : vector<8x32xf32>
    %218 = math.tanh %217 : vector<8x32xf32>
    %219 = arith.subf %192, %218 : vector<8x32xf32>
    %220 = arith.mulf %211, %219 : vector<8x32xf32>
    %221 = arith.addf %218, %220 : vector<8x32xf32>
    %222 = arith.truncf %221 : vector<8x32xf32> to vector<8x32xbf16>
    %cst_47 = arith.constant dense<0.000000e+00> : vector<8x20xf32>
    %223 = tpu.matmul %222, %1, %cst_47 {dimension_numbers = #tpu.dot_dimension_numbers<[1], [0], [0], [1], [0, 0, 1, 1], [], []>} : vector<8x32xbf16>, vector<32x20xbf16>, vector<8x20xf32> -> vector<8x20xf32>
    %224 = arith.addf %223, %20 : vector<8x20xf32>
    %225 = math.tanh %224 : vector<8x20xf32>
    %226 = arith.truncf %225 : vector<8x20xf32> to vector<8x20xbf16>
    %cst_48 = arith.constant dense<0.000000e+00> : vector<8x16xf32>
    %227 = tpu.matmul %226, %2, %cst_48 {dimension_numbers = #tpu.dot_dimension_numbers<[1], [0], [0], [1], [0, 0, 1, 1], [], []>} : vector<8x20xbf16>, vector<20x16xbf16>, vector<8x16xf32> -> vector<8x16xf32>
    %228 = arith.addf %227, %23 : vector<8x16xf32>
    %229 = tpu.concatenate %225, %221 in 1 : vector<8x20xf32>, vector<8x32xf32> -> vector<8x52xf32>
    %230 = arith.truncf %229 : vector<8x52xf32> to vector<8x52xbf16>
    %cst_49 = arith.constant dense<0.000000e+00> : vector<8x128xf32>
    %231 = tpu.matmul %230, %0, %cst_49 {dimension_numbers = #tpu.dot_dimension_numbers<[1], [0], [0], [1], [0, 0, 1, 1], [], []>} : vector<8x52xbf16>, vector<52x128xbf16>, vector<8x128xf32> -> vector<8x128xf32>
    %232 = vector.extract_strided_slice %231 {offsets = [0, 0], sizes = [8, 64], strides = [1, 1]} : vector<8x128xf32> to vector<8x64xf32>
    %233 = arith.addf %232, %8 : vector<8x64xf32>
    %234 = arith.negf %233 : vector<8x64xf32>
    %235 = math.exp %234 : vector<8x64xf32>
    %cst_50 = arith.constant 1.000000e+00 : f32
    %236 = vector.broadcast %cst_50 : f32 to vector<8x64xf32>
    %237 = arith.addf %236, %235 : vector<8x64xf32>
    %238 = arith.divf %236, %237 : vector<8x64xf32>
    %239 = vector.extract_strided_slice %238 {offsets = [0, 0], sizes = [8, 32], strides = [1, 1]} : vector<8x64xf32> to vector<8x32xf32>
    %240 = vector.extract_strided_slice %238 {offsets = [0, 32], sizes = [8, 32], strides = [1, 1]} : vector<8x64xf32> to vector<8x32xf32>
    %241 = vector.extract_strided_slice %231 {offsets = [0, 64], sizes = [8, 32], strides = [1, 1]} : vector<8x128xf32> to vector<8x32xf32>
    %242 = arith.addf %241, %14 : vector<8x32xf32>
    %243 = vector.extract_strided_slice %231 {offsets = [0, 96], sizes = [8, 32], strides = [1, 1]} : vector<8x128xf32> to vector<8x32xf32>
    %244 = arith.addf %243, %17 : vector<8x32xf32>
    %245 = arith.mulf %239, %244 : vector<8x32xf32>
    %246 = arith.addf %242, %245 : vector<8x32xf32>
    %247 = math.tanh %246 : vector<8x32xf32>
    %248 = arith.subf %221, %247 : vector<8x32xf32>
    %249 = arith.mulf %240, %248 : vector<8x32xf32>
    %250 = arith.addf %247, %249 : vector<8x32xf32>
    %251 = arith.truncf %250 : vector<8x32xf32> to vector<8x32xbf16>
    %cst_51 = arith.constant dense<0.000000e+00> : vector<8x20xf32>
    %252 = tpu.matmul %251, %1, %cst_51 {dimension_numbers = #tpu.dot_dimension_numbers<[1], [0], [0], [1], [0, 0, 1, 1], [], []>} : vector<8x32xbf16>, vector<32x20xbf16>, vector<8x20xf32> -> vector<8x20xf32>
    %253 = arith.addf %252, %20 : vector<8x20xf32>
    %254 = math.tanh %253 : vector<8x20xf32>
    %255 = arith.truncf %254 : vector<8x20xf32> to vector<8x20xbf16>
    %cst_52 = arith.constant dense<0.000000e+00> : vector<8x16xf32>
    %256 = tpu.matmul %255, %2, %cst_52 {dimension_numbers = #tpu.dot_dimension_numbers<[1], [0], [0], [1], [0, 0, 1, 1], [], []>} : vector<8x20xbf16>, vector<20x16xbf16>, vector<8x16xf32> -> vector<8x16xf32>
    %257 = arith.addf %256, %23 : vector<8x16xf32>
    %258 = tpu.concatenate %54, %83, %112, %141, %170, %199, %228, %257 in 1 : vector<8x16xf32>, vector<8x16xf32>, vector<8x16xf32>, vector<8x16xf32>, vector<8x16xf32>, vector<8x16xf32>, vector<8x16xf32>, vector<8x16xf32> -> vector<8x128xf32>
    %c0_53 = arith.constant 0 : index
    %c0_54 = arith.constant 0 : index
    %259 = vector.load %arg12[%c0_53, %c0_54] : memref<8x128xf32, #tpu.memory_space<vmem>>, vector<8x128xf32>
    tpu.vector_store %arg12[%c0_53, %c0_54], %258 {strides = array<i32>} : memref<8x128xf32, #tpu.memory_space<vmem>>, vector<8x128xf32>,
    return
  }
  func.func @transform_0(%arg0: i32) -> (i32, i32) {
    %c0_i32 = arith.constant 0 : i32
    %c0_i32_0 = arith.constant 0 : i32
    return %arg0, %c0_i32 : i32, i32
  }
  func.func @transform_1(%arg0: i32) -> (i32, i32) {
    %c0_i32 = arith.constant 0 : i32
    %c0_i32_0 = arith.constant 0 : i32
    %c0_i32_1 = arith.constant 0 : i32
    return %c0_i32, %c0_i32_0 : i32, i32
  }
  func.func @transform_2(%arg0: i32) -> (i32, i32) {
    %c0_i32 = arith.constant 0 : i32
    %c0_i32_0 = arith.constant 0 : i32
    %c0_i32_1 = arith.constant 0 : i32
    return %c0_i32, %c0_i32_0 : i32, i32
  }
  func.func @transform_3(%arg0: i32) -> (i32, i32) {
    %c0_i32 = arith.constant 0 : i32
    %c0_i32_0 = arith.constant 0 : i32
    %c0_i32_1 = arith.constant 0 : i32
    return %c0_i32, %c0_i32_0 : i32, i32
  }
  func.func @transform_4(%arg0: i32) -> (i32, i32) {
    %c0_i32 = arith.constant 0 : i32
    %c0_i32_0 = arith.constant 0 : i32
    %c0_i32_1 = arith.constant 0 : i32
    return %c0_i32, %c0_i32_0 : i32, i32
  }
  func.func @transform_5(%arg0: i32) -> (i32, i32) {
    %c0_i32 = arith.constant 0 : i32
    %c0_i32_0 = arith.constant 0 : i32
    %c0_i32_1 = arith.constant 0 : i32
    return %c0_i32, %c0_i32_0 : i32, i32
  }
  func.func @transform_6(%arg0: i32) -> (i32, i32) {
    %c0_i32 = arith.constant 0 : i32
    %c0_i32_0 = arith.constant 0 : i32
    %c0_i32_1 = arith.constant 0 : i32
    return %c0_i32, %c0_i32_0 : i32, i32
  }
  func.func @transform_7(%arg0: i32) -> (i32, i32) {
    %c0_i32 = arith.constant 0 : i32
    %c0_i32_0 = arith.constant 0 : i32
    %c0_i32_1 = arith.constant 0 : i32
    return %c0_i32, %c0_i32_0 : i32, i32
  }
  func.func @transform_8(%arg0: i32) -> (i32, i32) {
    %c0_i32 = arith.constant 0 : i32
    %c0_i32_0 = arith.constant 0 : i32
    %c0_i32_1 = arith.constant 0 : i32
    return %c0_i32, %c0_i32_0 : i32, i32
  }
  func.func @transform_9(%arg0: i32) -> (i32, i32) {
    %c0_i32 = arith.constant 0 : i32
    %c0_i32_0 = arith.constant 0 : i32
    %c0_i32_1 = arith.constant 0 : i32
    return %c0_i32, %c0_i32_0 : i32, i32
  }
  func.func @transform_10(%arg0: i32) -> (i32, i32) {
    %c0_i32 = arith.constant 0 : i32
    %c0_i32_0 = arith.constant 0 : i32
    %c0_i32_1 = arith.constant 0 : i32
    return %c0_i32, %c0_i32_0 : i32, i32
  }
  func.func @transform_11(%arg0: i32) -> (i32, i32) {
    %c0_i32 = arith.constant 0 : i32
    %c0_i32_0 = arith.constant 0 : i32
    return %arg0, %c0_i32 : i32, i32
  }
}

</mosaic_0001>

<llo_original>
// kernel: tpu_custom_call.1
$region0: #{tpu_custom_call.1}
  #allocation0 [shape = 'u32[]', space=smem, size = 0x4, offset = 0x4, fixed_abs, tag = 'smem constant byte address 0x4 - core index']
  #allocation1 [shape = 'u32[144,128]{1,0:T(1,128)}', space=vmem, size = 0x12000, scoped, tag = 'internal scratch']
  %s0 = inlined_call_operand.vmem [shape: f32[16,32], index: 0, kind: input, shape index: {}]
  %s1 = inlined_call_operand.vmem [shape: bf16[52,128], index: 1, kind: input, shape index: {}]
  %s2 = inlined_call_operand.hbm [shape: f32[1,64], index: 2, kind: input, shape index: {}]
  %s3 = inlined_call_operand.hbm [shape: f32[1,64], index: 3, kind: input, shape index: {}]
  %s4 = inlined_call_operand.hbm [shape: f32[1,32], index: 4, kind: input, shape index: {}]
  %s5 = inlined_call_operand.hbm [shape: f32[1,32], index: 5, kind: input, shape index: {}]
  %s6 = inlined_call_operand.hbm [shape: f32[1,32], index: 6, kind: input, shape index: {}]
  %s7 = inlined_call_operand.vmem [shape: bf16[32,20], index: 7, kind: input, shape index: {}]
  %s8 = inlined_call_operand.hbm [shape: f32[1,20], index: 8, kind: input, shape index: {}]
  %s9 = inlined_call_operand.vmem [shape: bf16[20,16], index: 9, kind: input, shape index: {}]
  %s10 = inlined_call_operand.vmem [shape: f32[1,16], index: 10, kind: input, shape index: {}]
  %s11 = inlined_call_operand.hbm [shape: f32[16,128], index: 11, kind: output, shape index: {}]
  %s12 = sld [smem:[#allocation0]]
  $region101: #{tpu_custom_call.1} parent=0
    _
  %s14 = ssub.s32 1, %s12
  %s15 = scalar_select 0, %s14, %s12
  $region1: #{tpu_custom_call.1} parent=0
    #allocation2 [shape = 'u8[512]{0}', space=vmem, size = 0x400, scoped, tag = 'input window, operand 2, single buffered']
    #allocation3 [shape = 's32[2]{0}', space=sflag, size = 0x8, scoped, tag = 'scoped memory for tpu_custom_call.1']
    #allocation4 [shape = 's32[2]{0}', space=sflag, size = 0x8, scoped, tag = 'scoped memory for tpu_custom_call.1']
    #allocation5 [shape = 'u8[512]{0}', space=vmem, size = 0x400, scoped, tag = 'input window, operand 3, single buffered']
    #allocation6 [shape = 's32[1]{0}', space=sflag, size = 0x4, scoped, tag = 'scoped memory for tpu_custom_call.1']
    #allocation7 [shape = 'u8[512]{0}', space=vmem, size = 0x400, scoped, tag = 'input window, operand 4, single buffered']
    #allocation8 [shape = 'u8[512]{0}', space=vmem, size = 0x400, scoped, tag = 'input window, operand 5, single buffered']
    #allocation9 [shape = 's32[1]{0}', space=sflag, size = 0x4, scoped, tag = 'scoped memory for tpu_custom_call.1']
    #allocation10 [shape = 'u8[512]{0}', space=vmem, size = 0x400, scoped, tag = 'input window, operand 6, single buffered']
    #allocation11 [shape = 'u8[512]{0}', space=vmem, size = 0x400, scoped, tag = 'input window, operand 8, single buffered']
    #allocation12 [shape = 's32[1]{0}', space=sflag, size = 0x4, scoped, tag = 'scoped memory for tpu_custom_call.1']
    #allocation13 [shape = 'u8[8192]{0}', space=vmem, size = 0x2000, scoped, tag = 'output window, operand 0']
    %16 = vsyncpa [#allocation3], 0
    %17 = vsyncpa [#allocation6], 0
    %18 = vsyncpa [#allocation9], 0
    %19 = vsyncpa [#allocation12], 0
    %20 = vsyncpa [#allocation4], 0
    %s21 = scalar_lea.sflag [#allocation4], 1
    %22 = vsyncpa %s21, 0
    loop: start=0, step=1, limit=4
    $region2: #{tpu_custom_call.1} parent=1 // loop_pre_header
      _
    $region3: #{tpu_custom_call.1} parent=1 // loop_header
      %s24 = sphi 0, %s28
      %p25 = scmp.ge.s32.totalorder %s24, 4
      %s34 = sphi 0, %s36
      %s37 = sphi 0, %s34
      %s38 = sphi 0, %s37
      %s54 = sphi 0, %s38
      %s58 = sphi 0, %s58
      %s60 = sphi 0, %s58
      %s61 = sphi 0, %s60
      %s75 = sphi 0, %s61
      %s79 = sphi 0, %s79
      %s81 = sphi 0, %s79
      %s82 = sphi 0, %s81
      %s96 = sphi 0, %s82
      %s100 = sphi 0, %s100
      %s102 = sphi 0, %s100
      %s103 = sphi 0, %s102
      %s117 = sphi 0, %s103
      %s121 = sphi 0, %s121
      %s123 = sphi 0, %s121
      %s124 = sphi 0, %s123
      %s138 = sphi 0, %s124
      %s142 = sphi 0, %s142
      %s144 = sphi 0, %s142
      %s145 = sphi 0, %s144
      %s159 = sphi 0, %s145
      %s163 = sphi 0, %s163
      %s165 = sphi 0, %s163
      %s166 = sphi 0, %s165
      %s180 = sphi 0, %s166
      %s184 = sphi 0, %s184
      %s186 = sphi 0, %s184
      %s187 = sphi 0, %s186
      %s201 = sphi 0, %s187
      %s205 = sphi 0, %s205
      %s207 = sphi 0, %s205
      %s208 = sphi 0, %s207
      %s222 = sphi 0, %s208
      %s226 = sphi 0, %s226
      %s228 = sphi 0, %s226
      %s229 = sphi 0, %s228
      %s243 = sphi 0, %s229
      %s247 = sphi 0, %s247
      %s249 = sphi 0, %s247
      %s250 = sphi 0, %s249
      %s264 = sphi 0, %s250
      %s270 = sphi 0, %s272
      %s273 = sphi 0, %s270
      %s274 = sphi 0, %s273
      %s290 = sphi 0, %s274
    $region4: #{tpu_custom_call.1} parent=1 // loop_header_branch
      %27 = sbr.rel (%p25) target = $region8
    $region5: #{tpu_custom_call.1} parent=1 // loop_body
      %s29 = ssub.s32 %s24, 1
      %s30 = ssub.s32 %s24, 2
      %s31 = sadd.s32 %s24, 1
      %s32 = ssub.s32 %s24, %s31
      %p33 = scmp.eq.s32.totalorder %s32, 0
      %s35 = sadd.s32 %s34, 1
      %s36 = scalar_select %p33, %s34, %s35
      %p39 = pneg %p33
      %p40 = scmp.eq.s32.totalorder %s24, 1
      %p41 = por %p39, %p40
      %p42 = scmp.ne.s32.totalorder %s34, %s37
      %p43 = scmp.eq.s32.totalorder %s24, 0
      %p44 = por %p42, %p43
      %p45 = scmp.ne.s32.totalorder %s34, %s37
      %p46 = scmp.eq.s32.totalorder %s29, 1
      %p47 = por %p45, %p46
      %p48 = scmp.ne.s32.totalorder %s37, %s38
      %p49 = scmp.eq.s32.totalorder %s29, 0
      %p50 = por %p48, %p49
      %p51 = scmp.ne.s32.totalorder %s37, %s38
      %p52 = scmp.eq.s32.totalorder %s30, 1
      %p53 = por %p51, %p52
      %p55 = scmp.ne.s32.totalorder %s38, %s54
      %p56 = scmp.eq.s32.totalorder %s30, 0
      %p57 = por %p55, %p56
      %s59 = sadd.s32 %s58, 1
      %p62 = scmp.eq.s32.totalorder %s24, 1
      %p63 = scmp.ne.s32.totalorder %s58, %s60
      %p64 = scmp.eq.s32.totalorder %s24, 0
      %p65 = por %p63, %p64
      %p66 = scmp.ne.s32.totalorder %s58, %s60
      %p67 = scmp.eq.s32.totalorder %s29, 1
      %p68 = por %p66, %p67
      %p69 = scmp.ne.s32.totalorder %s60, %s61
      %p70 = scmp.eq.s32.totalorder %s29, 0
      %p71 = por %p69, %p70
      %p72 = scmp.ne.s32.totalorder %s60, %s61
      %p73 = scmp.eq.s32.totalorder %s30, 1
      %p74 = por %p72, %p73
      %p76 = scmp.ne.s32.totalorder %s61, %s75
      %p77 = scmp.eq.s32.totalorder %s30, 0
      %p78 = por %p76, %p77
      %s80 = sadd.s32 %s79, 1
      %p83 = scmp.eq.s32.totalorder %s24, 1
      %p84 = scmp.ne.s32.totalorder %s79, %s81
      %p85 = scmp.eq.s32.totalorder %s24, 0
      %p86 = por %p84, %p85
      %p87 = scmp.ne.s32.totalorder %s79, %s81
      %p88 = scmp.eq.s32.totalorder %s29, 1
      %p89 = por %p87, %p88
      %p90 = scmp.ne.s32.totalorder %s81, %s82
      %p91 = scmp.eq.s32.totalorder %s29, 0
      %p92 = por %p90, %p91
      %p93 = scmp.ne.s32.totalorder %s81, %s82
      %p94 = scmp.eq.s32.totalorder %s30, 1
      %p95 = por %p93, %p94
      %p97 = scmp.ne.s32.totalorder %s82, %s96
      %p98 = scmp.eq.s32.totalorder %s30, 0
      %p99 = por %p97, %p98
      %s101 = sadd.s32 %s100, 1
      %p104 = scmp.eq.s32.totalorder %s24, 1
      %p105 = scmp.ne.s32.totalorder %s100, %s102
      %p106 = scmp.eq.s32.totalorder %s24, 0
      %p107 = por %p105, %p106
      %p108 = scmp.ne.s32.totalorder %s100, %s102
      %p109 = scmp.eq.s32.totalorder %s29, 1
      %p110 = por %p108, %p109
      %p111 = scmp.ne.s32.totalorder %s102, %s103
      %p112 = scmp.eq.s32.totalorder %s29, 0
      %p113 = por %p111, %p112
      %p114 = scmp.ne.s32.totalorder %s102, %s103
      %p115 = scmp.eq.s32.totalorder %s30, 1
      %p116 = por %p114, %p115
      %p118 = scmp.ne.s32.totalorder %s103, %s117
      %p119 = scmp.eq.s32.totalorder %s30, 0
      %p120 = por %p118, %p119
      %s122 = sadd.s32 %s121, 1
      %p125 = scmp.eq.s32.totalorder %s24, 1
      %p126 = scmp.ne.s32.totalorder %s121, %s123
      %p127 = scmp.eq.s32.totalorder %s24, 0
      %p128 = por %p126, %p127
      %p129 = scmp.ne.s32.totalorder %s121, %s123
      %p130 = scmp.eq.s32.totalorder %s29, 1
      %p131 = por %p129, %p130
      %p132 = scmp.ne.s32.totalorder %s123, %s124
      %p133 = scmp.eq.s32.totalorder %s29, 0
      %p134 = por %p132, %p133
      %p135 = scmp.ne.s32.totalorder %s123, %s124
      %p136 = scmp.eq.s32.totalorder %s30, 1
      %p137 = por %p135, %p136
      %p139 = scmp.ne.s32.totalorder %s124, %s138
      %p140 = scmp.eq.s32.totalorder %s30, 0
      %p141 = por %p139, %p140
      %s143 = sadd.s32 %s142, 1
      %p146 = scmp.eq.s32.totalorder %s24, 1
      %p147 = scmp.ne.s32.totalorder %s142, %s144
      %p148 = scmp.eq.s32.totalorder %s24, 0
      %p149 = por %p147, %p148
      %p150 = scmp.ne.s32.totalorder %s142, %s144
      %p151 = scmp.eq.s32.totalorder %s29, 1
      %p152 = por %p150, %p151
      %p153 = scmp.ne.s32.totalorder %s144, %s145
      %p154 = scmp.eq.s32.totalorder %s29, 0
      %p155 = por %p153, %p154
      %p156 = scmp.ne.s32.totalorder %s144, %s145
      %p157 = scmp.eq.s32.totalorder %s30, 1
      %p158 = por %p156, %p157
      %p160 = scmp.ne.s32.totalorder %s145, %s159
      %p161 = scmp.eq.s32.totalorder %s30, 0
      %p162 = por %p160, %p161
      %s164 = sadd.s32 %s163, 1
      %p167 = scmp.eq.s32.totalorder %s24, 1
      %p168 = scmp.ne.s32.totalorder %s163, %s165
      %p169 = scmp.eq.s32.totalorder %s24, 0
      %p170 = por %p168, %p169
      %p171 = scmp.ne.s32.totalorder %s163, %s165
      %p172 = scmp.eq.s32.totalorder %s29, 1
      %p173 = por %p171, %p172
      %p174 = scmp.ne.s32.totalorder %s165, %s166
      %p175 = scmp.eq.s32.totalorder %s29, 0
      %p176 = por %p174, %p175
      %p177 = scmp.ne.s32.totalorder %s165, %s166
      %p178 = scmp.eq.s32.totalorder %s30, 1
      %p179 = por %p177, %p178
      %p181 = scmp.ne.s32.totalorder %s166, %s180
      %p182 = scmp.eq.s32.totalorder %s30, 0
      %p183 = por %p181, %p182
      %s185 = sadd.s32 %s184, 1
      %p188 = scmp.eq.s32.totalorder %s24, 1
      %p189 = scmp.ne.s32.totalorder %s184, %s186
      %p190 = scmp.eq.s32.totalorder %s24, 0
      %p191 = por %p189, %p190
      %p192 = scmp.ne.s32.totalorder %s184, %s186
      %p193 = scmp.eq.s32.totalorder %s29, 1
      %p194 = por %p192, %p193
      %p195 = scmp.ne.s32.totalorder %s186, %s187
      %p196 = scmp.eq.s32.totalorder %s29, 0
      %p197 = por %p195, %p196
      %p198 = scmp.ne.s32.totalorder %s186, %s187
      %p199 = scmp.eq.s32.totalorder %s30, 1
      %p200 = por %p198, %p199
      %p202 = scmp.ne.s32.totalorder %s187, %s201
      %p203 = scmp.eq.s32.totalorder %s30, 0
      %p204 = por %p202, %p203
      %s206 = sadd.s32 %s205, 1
      %p209 = scmp.eq.s32.totalorder %s24, 1
      %p210 = scmp.ne.s32.totalorder %s205, %s207
      %p211 = scmp.eq.s32.totalorder %s24, 0
      %p212 = por %p210, %p211
      %p213 = scmp.ne.s32.totalorder %s205, %s207
      %p214 = scmp.eq.s32.totalorder %s29, 1
      %p215 = por %p213, %p214
      %p216 = scmp.ne.s32.totalorder %s207, %s208
      %p217 = scmp.eq.s32.totalorder %s29, 0
      %p218 = por %p216, %p217
      %p219 = scmp.ne.s32.totalorder %s207, %s208
      %p220 = scmp.eq.s32.totalorder %s30, 1
      %p221 = por %p219, %p220
      %p223 = scmp.ne.s32.totalorder %s208, %s222
      %p224 = scmp.eq.s32.totalorder %s30, 0
      %p225 = por %p223, %p224
      %s227 = sadd.s32 %s226, 1
      %p230 = scmp.eq.s32.totalorder %s24, 1
      %p231 = scmp.ne.s32.totalorder %s226, %s228
      %p232 = scmp.eq.s32.totalorder %s24, 0
      %p233 = por %p231, %p232
      %p234 = scmp.ne.s32.totalorder %s226, %s228
      %p235 = scmp.eq.s32.totalorder %s29, 1
      %p236 = por %p234, %p235
      %p237 = scmp.ne.s32.totalorder %s228, %s229
      %p238 = scmp.eq.s32.totalorder %s29, 0
      %p239 = por %p237, %p238
      %p240 = scmp.ne.s32.totalorder %s228, %s229
      %p241 = scmp.eq.s32.totalorder %s30, 1
      %p242 = por %p240, %p241
      %p244 = scmp.ne.s32.totalorder %s229, %s243
      %p245 = scmp.eq.s32.totalorder %s30, 0
      %p246 = por %p244, %p245
      %s248 = sadd.s32 %s247, 1
      %p251 = scmp.eq.s32.totalorder %s24, 1
      %p252 = scmp.ne.s32.totalorder %s247, %s249
      %p253 = scmp.eq.s32.totalorder %s24, 0
      %p254 = por %p252, %p253
      %p255 = scmp.ne.s32.totalorder %s247, %s249
      %p256 = scmp.eq.s32.totalorder %s29, 1
      %p257 = por %p255, %p256
      %p258 = scmp.ne.s32.totalorder %s249, %s250
      %p259 = scmp.eq.s32.totalorder %s29, 0
      %p260 = por %p258, %p259
      %p261 = scmp.ne.s32.totalorder %s249, %s250
      %p262 = scmp.eq.s32.totalorder %s30, 1
      %p263 = por %p261, %p262
      %p265 = scmp.ne.s32.totalorder %s250, %s264
      %p266 = scmp.eq.s32.totalorder %s30, 0
      %p267 = por %p265, %p266
      %s268 = ssub.s32 %s24, %s31
      %p269 = scmp.eq.s32.totalorder %s268, 0
      %s271 = sadd.s32 %s270, 1
      %s272 = scalar_select %p269, %s270, %s271
      %p275 = pneg %p269
      %p276 = scmp.eq.s32.totalorder %s24, 1
      %p277 = por %p275, %p276
      %p278 = scmp.ne.s32.totalorder %s270, %s273
      %p279 = scmp.eq.s32.totalorder %s24, 0
      %p280 = por %p278, %p279
      %p281 = scmp.ne.s32.totalorder %s270, %s273
      %p282 = scmp.eq.s32.totalorder %s29, 1
      %p283 = por %p281, %p282
      %p284 = scmp.ne.s32.totalorder %s273, %s274
      %p285 = scmp.eq.s32.totalorder %s29, 0
      %p286 = por %p284, %p285
      %p287 = scmp.ne.s32.totalorder %s273, %s274
      %p288 = scmp.eq.s32.totalorder %s30, 1
      %p289 = por %p287, %p288
      %p291 = scmp.ne.s32.totalorder %s274, %s290
      %p292 = scmp.eq.s32.totalorder %s30, 0
      %p293 = por %p291, %p292
      %p294 = scmp.le.s32.totalorder 1, %s24
      %p295 = scmp.lt.s32.totalorder %s24, 3
      %p296 = pnand %p294, %p295
      %p297 = pneg %p296
      // Predicated region
      $region9: #{tpu_custom_call.1} parent=5 // pred_check
        _
      $region10: #{tpu_custom_call.1} parent=5 // pred_check_branch
        %299 = sbr.rel (%p296) target = $region12
      $region11: #{tpu_custom_call.1} parent=5 // pred_region
        %s300 = ssub.s32 %s24, 1
        // Predicated region
        $region13: #{tpu_custom_call.1} parent=11 // pred_check
          %p301 = pneg %p71
        $region14: #{tpu_custom_call.1} parent=11 // pred_check_branch
          %303 = sbr.rel (%p301) target = $region16
        $region15: #{tpu_custom_call.1} parent=11 // pred_region
          _
        $region16: #{tpu_custom_call.1} parent=11 // pred_fallthru
          _
        // Predicated region
        $region17: #{tpu_custom_call.1} parent=11 // pred_check
          %p304 = pneg %p92
        $region18: #{tpu_custom_call.1} parent=11 // pred_check_branch
          %306 = sbr.rel (%p304) target = $region20
        $region19: #{tpu_custom_call.1} parent=11 // pred_region
          %s308 = ssub.s32 16, 16
          %309 = vsyncadd [#allocation3], %s308
          %s311 = sshll.u32 [#allocation2], 4
          %s312 = int_to_ptr.vmem [resolvable:$true] %s311
          %314 = dma.hbm_to_vmem [thread:$0]  %s2, 16, %s312, [#allocation3]
        $region20: #{tpu_custom_call.1} parent=11 // pred_fallthru
          _
        // Predicated region
        $region21: #{tpu_custom_call.1} parent=11 // pred_check
          %p315 = pneg %p113
        $region22: #{tpu_custom_call.1} parent=11 // pred_check_branch
          %317 = sbr.rel (%p315) target = $region24
        $region23: #{tpu_custom_call.1} parent=11 // pred_region
          %s319 = ssub.s32 16, 16
          %320 = vsyncadd [#allocation6], %s319
          %s322 = sshll.u32 [#allocation5], 4
          %s323 = int_to_ptr.vmem [resolvable:$true] %s322
          %325 = dma.hbm_to_vmem [thread:$0]  %s3, 16, %s323, [#allocation6]
        $region24: #{tpu_custom_call.1} parent=11 // pred_fallthru
          _
        // Predicated region
        $region25: #{tpu_custom_call.1} parent=11 // pred_check
          %p326 = pneg %p134
        $region26: #{tpu_custom_call.1} parent=11 // pred_check_branch
          %328 = sbr.rel (%p326) target = $region28
        $region27: #{tpu_custom_call.1} parent=11 // pred_region
          %s330 = ssub.s32 16, 16
          %331 = vsyncadd [#allocation6], %s330
          %s333 = sshll.u32 [#allocation7], 4
          %s334 = int_to_ptr.vmem [resolvable:$true] %s333
          %336 = dma.hbm_to_vmem [thread:$0]  %s4, 16, %s334, [#allocation6]
        $region28: #{tpu_custom_call.1} parent=11 // pred_fallthru
          _
        // Predicated region
        $region29: #{tpu_custom_call.1} parent=11 // pred_check
          %p337 = pneg %p155
        $region30: #{tpu_custom_call.1} parent=11 // pred_check_branch
          %339 = sbr.rel (%p337) target = $region32
        $region31: #{tpu_custom_call.1} parent=11 // pred_region
          %s341 = ssub.s32 16, 16
          %342 = vsyncadd [#allocation9], %s341
          %s344 = sshll.u32 [#allocation8], 4
          %s345 = int_to_ptr.vmem [resolvable:$true] %s344
          %347 = dma.hbm_to_vmem [thread:$0]  %s5, 16, %s345, [#allocation9]
        $region32: #{tpu_custom_call.1} parent=11 // pred_fallthru
          _
        // Predicated region
        $region33: #{tpu_custom_call.1} parent=11 // pred_check
          %p348 = pneg %p176
        $region34: #{tpu_custom_call.1} parent=11 // pred_check_branch
          %350 = sbr.rel (%p348) target = $region36
        $region35: #{tpu_custom_call.1} parent=11 // pred_region
          %s352 = ssub.s32 16, 16
          %353 = vsyncadd [#allocation9], %s352
          %s355 = sshll.u32 [#allocation10], 4
          %s356 = int_to_ptr.vmem [resolvable:$true] %s355
          %358 = dma.hbm_to_vmem [thread:$0]  %s6, 16, %s356, [#allocation9]
        $region36: #{tpu_custom_call.1} parent=11 // pred_fallthru
          _
        // Predicated region
        $region37: #{tpu_custom_call.1} parent=11 // pred_check
          %p359 = pneg %p197
        $region38: #{tpu_custom_call.1} parent=11 // pred_check_branch
          %361 = sbr.rel (%p359) target = $region40
        $region39: #{tpu_custom_call.1} parent=11 // pred_region
          _
        $region40: #{tpu_custom_call.1} parent=11 // pred_fallthru
          _
        // Predicated region
        $region41: #{tpu_custom_call.1} parent=11 // pred_check
          %p362 = pneg %p218
        $region42: #{tpu_custom_call.1} parent=11 // pred_check_branch
          %364 = sbr.rel (%p362) target = $region44
        $region43: #{tpu_custom_call.1} parent=11 // pred_region
          %s366 = ssub.s32 16, 16
          %367 = vsyncadd [#allocation12], %s366
          %s369 = sshll.u32 [#allocation11], 4
          %s370 = int_to_ptr.vmem [resolvable:$true] %s369
          %372 = dma.hbm_to_vmem [thread:$0]  %s8, 16, %s370, [#allocation12]
        $region44: #{tpu_custom_call.1} parent=11 // pred_fallthru
          _
        // Predicated region
        $region45: #{tpu_custom_call.1} parent=11 // pred_check
          %p373 = pneg %p239
        $region46: #{tpu_custom_call.1} parent=11 // pred_check_branch
          %375 = sbr.rel (%p373) target = $region48
        $region47: #{tpu_custom_call.1} parent=11 // pred_region
          _
        $region48: #{tpu_custom_call.1} parent=11 // pred_fallthru
          _
        // Predicated region
        $region49: #{tpu_custom_call.1} parent=11 // pred_check
          %p376 = pneg %p260
        $region50: #{tpu_custom_call.1} parent=11 // pred_check_branch
          %378 = sbr.rel (%p376) target = $region52
        $region51: #{tpu_custom_call.1} parent=11 // pred_region
          _
        $region52: #{tpu_custom_call.1} parent=11 // pred_fallthru
          _
      $region12: #{tpu_custom_call.1} parent=5 // pred_fallthru
        _
      %p379 = scmp.lt.s32.totalorder %s24, 2
      // Predicated region
      $region53: #{tpu_custom_call.1} parent=5 // pred_check
        %p380 = pneg %p379
      $region54: #{tpu_custom_call.1} parent=5 // pred_check_branch
        %382 = sbr.rel (%p380) target = $region56
      $region55: #{tpu_custom_call.1} parent=5 // pred_region
        // Predicated region
        $region57: #{tpu_custom_call.1} parent=55 // pred_check
          %p383 = pneg %p44
        $region58: #{tpu_custom_call.1} parent=55 // pred_check_branch
          %385 = sbr.rel (%p383) target = $region60
        $region59: #{tpu_custom_call.1} parent=55 // pred_region
          %p386 = scmp.lt.s32.totalorder %s24, 1
          %s387 = scalar_select %p386, %s24, 1
          %s388 = smul.addr %s387, 8
          %s389 = scalar_lea.vmem %s0, %s388
        $region60: #{tpu_custom_call.1} parent=55 // pred_fallthru
          _
      $region56: #{tpu_custom_call.1} parent=5 // pred_fallthru
        _
      %p390 = scmp.le.s32.totalorder 1, %s24
      %p391 = scmp.lt.s32.totalorder %s24, 3
      %p392 = pnand %p390, %p391
      %p393 = pneg %p392
      // Predicated region
      $region61: #{tpu_custom_call.1} parent=5 // pred_check
        _
      $region62: #{tpu_custom_call.1} parent=5 // pred_check_branch
        %395 = sbr.rel (%p392) target = $region64
      $region63: #{tpu_custom_call.1} parent=5 // pred_region
        %s396 = ssub.s32 %s24, 1
        // Predicated region
        $region65: #{tpu_custom_call.1} parent=63 // pred_check
          %p397 = pneg %p92
        $region66: #{tpu_custom_call.1} parent=63 // pred_check_branch
          %399 = sbr.rel (%p397) target = $region68
        $region67: #{tpu_custom_call.1} parent=63 // pred_region
          %400 = dma.done [#allocation3], 16
        $region68: #{tpu_custom_call.1} parent=63 // pred_fallthru
          _
        // Predicated region
        $region69: #{tpu_custom_call.1} parent=63 // pred_check
          %p401 = pneg %p113
        $region70: #{tpu_custom_call.1} parent=63 // pred_check_branch
          %403 = sbr.rel (%p401) target = $region72
        $region71: #{tpu_custom_call.1} parent=63 // pred_region
          %404 = dma.done [#allocation6], 16
        $region72: #{tpu_custom_call.1} parent=63 // pred_fallthru
          _
        // Predicated region
        $region73: #{tpu_custom_call.1} parent=63 // pred_check
          %p405 = pneg %p134
        $region74: #{tpu_custom_call.1} parent=63 // pred_check_branch
          %407 = sbr.rel (%p405) target = $region76
        $region75: #{tpu_custom_call.1} parent=63 // pred_region
          %408 = dma.done [#allocation6], 16
        $region76: #{tpu_custom_call.1} parent=63 // pred_fallthru
          _
        // Predicated region
        $region77: #{tpu_custom_call.1} parent=63 // pred_check
          %p409 = pneg %p155
        $region78: #{tpu_custom_call.1} parent=63 // pred_check_branch
          %411 = sbr.rel (%p409) target = $region80
        $region79: #{tpu_custom_call.1} parent=63 // pred_region
          %412 = dma.done [#allocation9], 16
        $region80: #{tpu_custom_call.1} parent=63 // pred_fallthru
          _
        // Predicated region
        $region81: #{tpu_custom_call.1} parent=63 // pred_check
          %p413 = pneg %p176
        $region82: #{tpu_custom_call.1} parent=63 // pred_check_branch
          %415 = sbr.rel (%p413) target = $region84
        $region83: #{tpu_custom_call.1} parent=63 // pred_region
          %416 = dma.done [#allocation9], 16
        $region84: #{tpu_custom_call.1} parent=63 // pred_fallthru
          _
        // Predicated region
        $region85: #{tpu_custom_call.1} parent=63 // pred_check
          %p417 = pneg %p218
        $region86: #{tpu_custom_call.1} parent=63 // pred_check_branch
          %419 = sbr.rel (%p417) target = $region88
        $region87: #{tpu_custom_call.1} parent=63 // pred_region
          %420 = dma.done [#allocation12], 16
        $region88: #{tpu_custom_call.1} parent=63 // pred_fallthru
          _
        %p421 = scmp.lt.s32.totalorder %s29, 1
        %s422 = scalar_select %p421, %s29, 1
        %s423 = smul.addr %s422, 8
        %s424 = scalar_lea.vmem %s0, %s423
        %p425 = pneg %p50
        %p426 = pneg %p47
        %p427 = pneg %p71
        %p428 = pneg %p68
        %p429 = pneg %p92
        %p430 = pneg %p89
        %p431 = pneg %p113
        %p432 = pneg %p110
        %p433 = pneg %p134
        %p434 = pneg %p131
        %p435 = pneg %p155
        %p436 = pneg %p152
        %p437 = pneg %p176
        %p438 = pneg %p173
        %p439 = pneg %p197
        %p440 = pneg %p194
        %p441 = pneg %p218
        %p442 = pneg %p215
        %p443 = pneg %p239
        %p444 = pneg %p236
        %p445 = pneg %p260
        %p446 = pneg %p257
        %p447 = pneg %p286
        %p448 = pneg %p283
        %s449 = sand.u32 %s273, 1
        %s450 = scalar_lea.sflag [#allocation4], %s449
        %s451 = sand.u32 %s273, 1
        %s452 = smul.addr %s451, 8
        %s453 = scalar_lea.vmem [#allocation13], %s452
        %p454 = scmp.lt.s32.totalorder %s29, 1
        %s455 = scalar_select %p454, %s29, 1
        %s456 = smul.addr %s455, 8
        %s457 = scalar_lea.vmem %s0, %s456
        %v459 = vld [vmem:[%s1] sm:$0xf]
        %v460 = vld [vmem:[%s1 + $0x4] sm:$0xf]
        %v461 = vld [vmem:[%s1 + $0x8] sm:$0xf]
        %v462 = vld [vmem:[%s1 + $0xc] sm:$0xf]
        %v463 = vld [vmem:[%s1 + $0x10] sm:$0xf]
        %v464 = vld [vmem:[%s1 + $0x14] sm:$0xf]
        %v465 = vld [vmem:[%s1 + $0x18] sm:$0x3]
        %v466 = vld [vmem:[%s7] sm:$0xf]
        %v467 = vld [vmem:[%s7 + $0x4] sm:$0xf]
        %v468 = vld [vmem:[%s7 + $0x8] sm:$0xf]
        %v469 = vld [vmem:[%s7 + $0xc] sm:$0xf]
        %v470 = vld [vmem:[%s9] sm:$0xf]
        %v471 = vld [vmem:[%s9 + $0x4] sm:$0xf]
        %v472 = vld [vmem:[%s9 + $0x8] sm:$0x3]
        %v473 = vld [vmem:[#allocation2] sm:$0x1]
        %v475 = vlaneseq
        %v476 = vshrl.u32 %v475, 7
        %v477 = vsub.s32 0, %v476
        %v478 = vrot.slane %v473, %v477
        %v480 = vld [vmem:[#allocation5] sm:$0x1]
        %v482 = vlaneseq
        %v483 = vshrl.u32 %v482, 7
        %v484 = vsub.s32 0, %v483
        %v485 = vrot.slane %v480, %v484
        %v487 = vld [vmem:[#allocation7] sm:$0x1]
        %v489 = vlaneseq
        %v490 = vshrl.u32 %v489, 7
        %v491 = vsub.s32 0, %v490
        %v492 = vrot.slane %v487, %v491
        %v493 = vld [vmem:[#allocation8] sm:$0x1]
        %v495 = vlaneseq
        %v496 = vshrl.u32 %v495, 7
        %v497 = vsub.s32 0, %v496
        %v498 = vrot.slane %v493, %v497
        %v499 = vld [vmem:[#allocation10] sm:$0x1]
        %v501 = vlaneseq
        %v502 = vshrl.u32 %v501, 7
        %v503 = vsub.s32 0, %v502
        %v504 = vrot.slane %v499, %v503
        %v505 = vld [vmem:[#allocation11] sm:$0x1]
        %v507 = vlaneseq
        %v508 = vshrl.u32 %v507, 7
        %v509 = vsub.s32 0, %v508
        %v510 = vrot.slane %v505, %v509
        %v512 = vld [vmem:[%s10] sm:$0x1]
        %v514 = vlaneseq
        %v515 = vshrl.u32 %v514, 7
        %v516 = vsub.s32 0, %v515
        %v517 = vrot.slane %v512, %v516
        %v519 = vld [vmem:[%s457] sm:$0xff]
        %521 = vrot.lane.b32.xlu0 %v519, 20
        %v522 = vpop.permute.xlu0 %521
        %vm524 = vcmask 162816
        %v525 = vsel %vm524, 0.0, %v522
        %v526 = vpack.c.bf16 %v525, %v525
        %v534 = vunpack.c.l.b16 %v459
        %v535 = vunpack.c.l.b16 %v460
        %v536 = vunpack.c.l.b16 %v461
        %v537 = vunpack.c.l.b16 %v462
        %v538 = vunpack.c.l.b16 %v463
        %v539 = vunpack.c.l.b16 %v464
        %v540 = vunpack.c.l.b16 %v465
        %v541 = vpack.c.b16 %v535, %v534
        %v542 = vpack.c.b16 %v537, %v536
        %v543 = vpack.c.b16 %v539, %v538
        %v544 = vpack.c.b16 %v540, %v540
        %vm548 = vcmask 424960
        %v550 = vsel %vm548, %v526, 0
        %vm552 = vcmask 1041408
        %v554 = vsel %vm552, %v544, 0
        %556 = vmatprep.subr.bf16.mxu0 0
        %557 = vmatpush1.bf16.msra.mxu0 0
        %558 = vmatprep.subr.bf16.mxu0 0
        %559 = vmatpush1.bf16.msra.mxu0 0
        %560 = vmatprep.subr.bf16.mxu0 0
        %561 = vmatpush1.bf16.msra.mxu0 0
        %562 = vmatprep.subr.bf16.mxu0 0
        %563 = vmatpush1.bf16.msra.mxu0 0
        %564 = vmatprep.subr.bf16.mxu0 0
        %565 = vmatpush1.bf16.msra.mxu0 %v554
        %566 = vmatprep.subr.bf16.mxu0 0
        %567 = vmatpush1.bf16.msra.mxu0 %v543
        %568 = vmatprep.subr.bf16.mxu0 0
        %569 = vmatpush1.bf16.msra.mxu0 %v542
        %570 = vmatprep.subr.bf16.mxu0 0
        %571 = vmatpush1.bf16.msra.mxu0 %v541
        %572 = vmatprep.subr.bf16.mxu0 0
        %573 = vmatpush2.bf16.msra.mxu0 0
        %574 = vmatprep.subr.bf16.mxu0 0
        %575 = vmatpush2.bf16.msra.mxu0 0
        %576 = vmatprep.subr.bf16.mxu0 0
        %577 = vmatpush2.bf16.msra.mxu0 0
        %578 = vmatprep.subr.bf16.mxu0 0
        %579 = vmatpush2.bf16.msra.mxu0 0
        %580 = vmatprep.subr.bf16.mxu0 0
        %581 = vmatpush2.bf16.msra.mxu0 0
        %582 = vmatprep.subr.bf16.mxu0 0
        %583 = vmatpush2.bf16.msra.mxu0 0
        %584 = vmatprep.subr.bf16.mxu0 0
        %585 = vmatpush2.bf16.msra.mxu0 0
        %586 = vmatprep.subr.bf16.mxu0 0
        %587 = vmatpush2.bf16.msra.mxu0 0
        %588 = vmatprep.mubr.bf16.mxu0 0
        %589 = vmatmul.mubr.bf16.gmra.mxu0 %v550
        %v590 = vpop.f32.mrf.mxu0
        %v591 = vadd.f32 0.0, %v590
        %v592 = vpop.f32.mrf.mxu0
        %v593 = vpop.f32.mrf.mxu0
        %v594 = vpop.f32.mrf.mxu0
        %595 = vdwg.mxu0
        %v596 = vadd.f32 %v591, %v478
        %v597 = vxor.u32 %v596, 2147483648
        %v598 = vmul.f32 %v597, 1.442695
        %v599 = vpow.pop %v598
        %v600 = vadd.f32 %v599, 1.0
        %v601 = vrcp.pop %v600
        %v602 = vmul.f32 1.0, %v601
        %603 = vrot.lane.b32.xlu0 %v492, 64
        %v604 = vpop.permute.xlu0 %603
        %v606 = vadd.f32 %v591, %v604
        %607 = vrot.lane.b32.xlu0 %v504, 96
        %v608 = vpop.permute.xlu0 %607
        %v610 = vadd.f32 %v591, %v608
        %612 = vrot.lane.b32.xlu0 %v610, 32
        %v613 = vpop.permute.xlu0 %612
        %v615 = vmul.f32 %v602, %v613
        %617 = vrot.lane.b32.xlu0 %v615, 64
        %v618 = vpop.permute.xlu0 %617
        %v620 = vadd.f32 %v606, %v618
        %v621 = vtanh.pop %v620
        %623 = vrot.lane.b32.xlu0 %v621, 64
        %v624 = vpop.permute.xlu0 %623
        %v626 = vsub.f32 %v519, %v624
        %628 = vrot.lane.b32.xlu0 %v626, 32
        %v629 = vpop.permute.xlu0 %628
        %v631 = vmul.f32 %v602, %v629
        %633 = vrot.lane.b32.xlu0 %v631, 32
        %v634 = vpop.permute.xlu0 %633
        %v636 = vadd.f32 %v621, %v634
        %v637 = vpack.c.bf16 %v636, %v636
        %639 = vrot.lane.b32.xlu0 %v637, 64
        %v640 = vpop.permute.xlu0 %639
        %v645 = vunpack.c.l.b16 %v466
        %v646 = vunpack.c.l.b16 %v467
        %v647 = vunpack.c.l.b16 %v468
        %v648 = vunpack.c.l.b16 %v469
        %v649 = vpack.c.b16 %v646, %v645
        %v650 = vpack.c.b16 %v648, %v647
        %vm653 = vcmask 261120
        %v655 = vsel %vm653, %v640, 0
        %657 = vmatprep.subr.bf16.mxu0 0
        %658 = vmatpush1.bf16.msra.mxu0 0
        %659 = vmatprep.subr.bf16.mxu0 0
        %660 = vmatpush1.bf16.msra.mxu0 0
        %661 = vmatprep.subr.bf16.mxu0 0
        %662 = vmatpush1.bf16.msra.mxu0 0
        %663 = vmatprep.subr.bf16.mxu0 0
        %664 = vmatpush1.bf16.msra.mxu0 0
        %665 = vmatprep.subr.bf16.mxu0 0
        %666 = vmatpush1.bf16.msra.mxu0 0
        %667 = vmatprep.subr.bf16.mxu0 0
        %668 = vmatpush1.bf16.msra.mxu0 0
        %669 = vmatprep.subr.bf16.mxu0 0
        %670 = vmatpush1.bf16.msra.mxu0 %v650
        %671 = vmatprep.subr.bf16.mxu0 0
        %672 = vmatpush1.bf16.msra.mxu0 %v649
        %673 = vmatprep.subr.bf16.mxu0 0
        %674 = vmatpush2.bf16.msra.mxu0 0
        %675 = vmatprep.subr.bf16.mxu0 0
        %676 = vmatpush2.bf16.msra.mxu0 0
        %677 = vmatprep.subr.bf16.mxu0 0
        %678 = vmatpush2.bf16.msra.mxu0 0
        %679 = vmatprep.subr.bf16.mxu0 0
        %680 = vmatpush2.bf16.msra.mxu0 0
        %681 = vmatprep.subr.bf16.mxu0 0
        %682 = vmatpush2.bf16.msra.mxu0 0
        %683 = vmatprep.subr.bf16.mxu0 0
        %684 = vmatpush2.bf16.msra.mxu0 0
        %685 = vmatprep.subr.bf16.mxu0 0
        %686 = vmatpush2.bf16.msra.mxu0 0
        %687 = vmatprep.subr.bf16.mxu0 0
        %688 = vmatpush2.bf16.msra.mxu0 0
        %689 = vmatprep.mubr.bf16.mxu0 0
        %690 = vmatmul.mubr.bf16.gmra.mxu0 %v655
        %v691 = vpop.f32.mrf.mxu0
        %v692 = vadd.f32 %v510, %v691
        %v693 = vpop.f32.mrf.mxu0
        %v694 = vpop.f32.mrf.mxu0
        %v695 = vpop.f32.mrf.mxu0
        %696 = vdwg.mxu0
        %v697 = vtanh.pop %v692
        %v698 = vpack.c.bf16 %v697, %v697
        %v702 = vunpack.c.l.b16 %v470
        %v703 = vunpack.c.l.b16 %v471
        %v704 = vunpack.c.l.b16 %v472
        %v705 = vpack.c.b16 %v703, %v702
        %v706 = vpack.c.b16 %v704, %v704
        %v709 = vsel %vm524, %v698, 0
        %v712 = vsel %vm552, %v706, 0
        %714 = vmatprep.subr.bf16.mxu0 0
        %715 = vmatpush1.bf16.msra.mxu0 0
        %716 = vmatprep.subr.bf16.mxu0 0
        %717 = vmatpush1.bf16.msra.mxu0 0
        %718 = vmatprep.subr.bf16.mxu0 0
        %719 = vmatpush1.bf16.msra.mxu0 0
        %720 = vmatprep.subr.bf16.mxu0 0
        %721 = vmatpush1.bf16.msra.mxu0 0
        %722 = vmatprep.subr.bf16.mxu0 0
        %723 = vmatpush1.bf16.msra.mxu0 0
        %724 = vmatprep.subr.bf16.mxu0 0
        %725 = vmatpush1.bf16.msra.mxu0 0
        %726 = vmatprep.subr.bf16.mxu0 0
        %727 = vmatpush1.bf16.msra.mxu0 %v712
        %728 = vmatprep.subr.bf16.mxu0 0
        %729 = vmatpush1.bf16.msra.mxu0 %v705
        %730 = vmatprep.subr.bf16.mxu0 0
        %731 = vmatpush2.bf16.msra.mxu0 0
        %732 = vmatprep.subr.bf16.mxu0 0
        %733 = vmatpush2.bf16.msra.mxu0 0
        %734 = vmatprep.subr.bf16.mxu0 0
        %735 = vmatpush2.bf16.msra.mxu0 0
        %736 = vmatprep.subr.bf16.mxu0 0
        %737 = vmatpush2.bf16.msra.mxu0 0
        %738 = vmatprep.subr.bf16.mxu0 0
        %739 = vmatpush2.bf16.msra.mxu0 0
        %740 = vmatprep.subr.bf16.mxu0 0
        %741 = vmatpush2.bf16.msra.mxu0 0
        %742 = vmatprep.subr.bf16.mxu0 0
        %743 = vmatpush2.bf16.msra.mxu0 0
        %744 = vmatprep.subr.bf16.mxu0 0
        %745 = vmatpush2.bf16.msra.mxu0 0
        %746 = vmatprep.mubr.bf16.mxu0 0
        %747 = vmatmul.mubr.bf16.gmra.mxu0 %v709
        %v748 = vpop.f32.mrf.mxu0
        %v749 = vadd.f32 %v517, %v748
        %v750 = vpop.f32.mrf.mxu0
        %v751 = vpop.f32.mrf.mxu0
        %v752 = vpop.f32.mrf.mxu0
        %753 = vdwg.mxu0
        %755 = vrot.lane.b32.xlu0 %v636, 84
        %v756 = vpop.permute.xlu0 %755
        %v758 = vsel %vm524, %v697, %v756
        %v759 = vpack.c.bf16 %v758, %v758
        %v761 = vsel %vm548, %v759, 0
        %763 = vmatprep.subr.bf16.mxu0 0
        %764 = vmatpush1.bf16.msra.mxu0 0
        %765 = vmatprep.subr.bf16.mxu0 0
        %766 = vmatpush1.bf16.msra.mxu0 0
        %767 = vmatprep.subr.bf16.mxu0 0
        %768 = vmatpush1.bf16.msra.mxu0 0
        %769 = vmatprep.subr.bf16.mxu0 0
        %770 = vmatpush1.bf16.msra.mxu0 0
        %771 = vmatprep.subr.bf16.mxu0 0
        %772 = vmatpush1.bf16.msra.mxu0 %v554
        %773 = vmatprep.subr.bf16.mxu0 0
        %774 = vmatpush1.bf16.msra.mxu0 %v543
        %775 = vmatprep.subr.bf16.mxu0 0
        %776 = vmatpush1.bf16.msra.mxu0 %v542
        %777 = vmatprep.subr.bf16.mxu0 0
        %778 = vmatpush1.bf16.msra.mxu0 %v541
        %779 = vmatprep.subr.bf16.mxu0 0
        %780 = vmatpush2.bf16.msra.mxu0 0
        %781 = vmatprep.subr.bf16.mxu0 0
        %782 = vmatpush2.bf16.msra.mxu0 0
        %783 = vmatprep.subr.bf16.mxu0 0
        %784 = vmatpush2.bf16.msra.mxu0 0
        %785 = vmatprep.subr.bf16.mxu0 0
        %786 = vmatpush2.bf16.msra.mxu0 0
        %787 = vmatprep.subr.bf16.mxu0 0
        %788 = vmatpush2.bf16.msra.mxu0 0
        %789 = vmatprep.subr.bf16.mxu0 0
        %790 = vmatpush2.bf16.msra.mxu0 0
        %791 = vmatprep.subr.bf16.mxu0 0
        %792 = vmatpush2.bf16.msra.mxu0 0
        %793 = vmatprep.subr.bf16.mxu0 0
        %794 = vmatpush2.bf16.msra.mxu0 0
        %795 = vmatprep.mubr.bf16.mxu0 0
        %796 = vmatmul.mubr.bf16.gmra.mxu0 %v761
        %v797 = vpop.f32.mrf.mxu0
        %v798 = vadd.f32 0.0, %v797
        %v799 = vpop.f32.mrf.mxu0
        %v800 = vpop.f32.mrf.mxu0
        %v801 = vpop.f32.mrf.mxu0
        %802 = vdwg.mxu0
        %v803 = vadd.f32 %v798, %v485
        %v804 = vxor.u32 %v803, 2147483648
        %v805 = vmul.f32 %v804, 1.442695
        %v806 = vpow.pop %v805
        %v807 = vadd.f32 %v806, 1.0
        %v808 = vrcp.pop %v807
        %v809 = vmul.f32 1.0, %v808
        %810 = vrot.lane.b32.xlu0 %v498, 64
        %v811 = vpop.permute.xlu0 %810
        %v813 = vadd.f32 %v798, %v811
        %v814 = vadd.f32 %v798, %v608
        %816 = vrot.lane.b32.xlu0 %v814, 32
        %v817 = vpop.permute.xlu0 %816
        %v819 = vmul.f32 %v809, %v817
        %821 = vrot.lane.b32.xlu0 %v819, 64
        %v822 = vpop.permute.xlu0 %821
        %v824 = vadd.f32 %v813, %v822
        %v825 = vtanh.pop %v824
        %v826 = vsub.f32 %v636, %v825
        %828 = vrot.lane.b32.xlu0 %v826, 96
        %v829 = vpop.permute.xlu0 %828
        %v831 = vmul.f32 %v809, %v829
        %833 = vrot.lane.b32.xlu0 %v831, 32
        %v834 = vpop.permute.xlu0 %833
        %v836 = vadd.f32 %v825, %v834
        %v837 = vpack.c.bf16 %v836, %v836
        %839 = vrot.lane.b32.xlu0 %v837, 64
        %v840 = vpop.permute.xlu0 %839
        %v842 = vsel %vm653, %v840, 0
        %844 = vmatprep.subr.bf16.mxu0 0
        %845 = vmatpush1.bf16.msra.mxu0 0
        %846 = vmatprep.subr.bf16.mxu0 0
        %847 = vmatpush1.bf16.msra.mxu0 0
        %848 = vmatprep.subr.bf16.mxu0 0
        %849 = vmatpush1.bf16.msra.mxu0 0
        %850 = vmatprep.subr.bf16.mxu0 0
        %851 = vmatpush1.bf16.msra.mxu0 0
        %852 = vmatprep.subr.bf16.mxu0 0
        %853 = vmatpush1.bf16.msra.mxu0 0
        %854 = vmatprep.subr.bf16.mxu0 0
        %855 = vmatpush1.bf16.msra.mxu0 0
        %856 = vmatprep.subr.bf16.mxu0 0
        %857 = vmatpush1.bf16.msra.mxu0 %v650
        %858 = vmatprep.subr.bf16.mxu0 0
        %859 = vmatpush1.bf16.msra.mxu0 %v649
        %860 = vmatprep.subr.bf16.mxu0 0
        %861 = vmatpush2.bf16.msra.mxu0 0
        %862 = vmatprep.subr.bf16.mxu0 0
        %863 = vmatpush2.bf16.msra.mxu0 0
        %864 = vmatprep.subr.bf16.mxu0 0
        %865 = vmatpush2.bf16.msra.mxu0 0
        %866 = vmatprep.subr.bf16.mxu0 0
        %867 = vmatpush2.bf16.msra.mxu0 0
        %868 = vmatprep.subr.bf16.mxu0 0
        %869 = vmatpush2.bf16.msra.mxu0 0
        %870 = vmatprep.subr.bf16.mxu0 0
        %871 = vmatpush2.bf16.msra.mxu0 0
        %872 = vmatprep.subr.bf16.mxu0 0
        %873 = vmatpush2.bf16.msra.mxu0 0
        %874 = vmatprep.subr.bf16.mxu0 0
        %875 = vmatpush2.bf16.msra.mxu0 0
        %876 = vmatprep.mubr.bf16.mxu0 0
        %877 = vmatmul.mubr.bf16.gmra.mxu0 %v842
        %v878 = vpop.f32.mrf.mxu0
        %v879 = vadd.f32 %v510, %v878
        %v880 = vpop.f32.mrf.mxu0
        %v881 = vpop.f32.mrf.mxu0
        %v882 = vpop.f32.mrf.mxu0
        %883 = vdwg.mxu0
        %v884 = vtanh.pop %v879
        %v885 = vpack.c.bf16 %v884, %v884
        %v887 = vsel %vm524, %v885, 0
        %889 = vmatprep.subr.bf16.mxu0 0
        %890 = vmatpush1.bf16.msra.mxu0 0
        %891 = vmatprep.subr.bf16.mxu0 0
        %892 = vmatpush1.bf16.msra.mxu0 0
        %893 = vmatprep.subr.bf16.mxu0 0
        %894 = vmatpush1.bf16.msra.mxu0 0
        %895 = vmatprep.subr.bf16.mxu0 0
        %896 = vmatpush1.bf16.msra.mxu0 0
        %897 = vmatprep.subr.bf16.mxu0 0
        %898 = vmatpush1.bf16.msra.mxu0 0
        %899 = vmatprep.subr.bf16.mxu0 0
        %900 = vmatpush1.bf16.msra.mxu0 0
        %901 = vmatprep.subr.bf16.mxu0 0
        %902 = vmatpush1.bf16.msra.mxu0 %v712
        %903 = vmatprep.subr.bf16.mxu0 0
        %904 = vmatpush1.bf16.msra.mxu0 %v705
        %905 = vmatprep.subr.bf16.mxu0 0
        %906 = vmatpush2.bf16.msra.mxu0 0
        %907 = vmatprep.subr.bf16.mxu0 0
        %908 = vmatpush2.bf16.msra.mxu0 0
        %909 = vmatprep.subr.bf16.mxu0 0
        %910 = vmatpush2.bf16.msra.mxu0 0
        %911 = vmatprep.subr.bf16.mxu0 0
        %912 = vmatpush2.bf16.msra.mxu0 0
        %913 = vmatprep.subr.bf16.mxu0 0
        %914 = vmatpush2.bf16.msra.mxu0 0
        %915 = vmatprep.subr.bf16.mxu0 0
        %916 = vmatpush2.bf16.msra.mxu0 0
        %917 = vmatprep.subr.bf16.mxu0 0
        %918 = vmatpush2.bf16.msra.mxu0 0
        %919 = vmatprep.subr.bf16.mxu0 0
        %920 = vmatpush2.bf16.msra.mxu0 0
        %921 = vmatprep.mubr.bf16.mxu0 0
        %922 = vmatmul.mubr.bf16.gmra.mxu0 %v887
        %v923 = vpop.f32.mrf.mxu0
        %v924 = vadd.f32 %v517, %v923
        %v925 = vpop.f32.mrf.mxu0
        %v926 = vpop.f32.mrf.mxu0
        %v927 = vpop.f32.mrf.mxu0
        %928 = vdwg.mxu0
        %930 = vrot.lane.b32.xlu0 %v836, 84
        %v931 = vpop.permute.xlu0 %930
        %v933 = vsel %vm524, %v884, %v931
        %v934 = vpack.c.bf16 %v933, %v933
        %v936 = vsel %vm548, %v934, 0
        %938 = vmatprep.subr.bf16.mxu0 0
        %939 = vmatpush1.bf16.msra.mxu0 0
        %940 = vmatprep.subr.bf16.mxu0 0
        %941 = vmatpush1.bf16.msra.mxu0 0
        %942 = vmatprep.subr.bf16.mxu0 0
        %943 = vmatpush1.bf16.msra.mxu0 0
        %944 = vmatprep.subr.bf16.mxu0 0
        %945 = vmatpush1.bf16.msra.mxu0 0
        %946 = vmatprep.subr.bf16.mxu0 0
        %947 = vmatpush1.bf16.msra.mxu0 %v554
        %948 = vmatprep.subr.bf16.mxu0 0
        %949 = vmatpush1.bf16.msra.mxu0 %v543
        %950 = vmatprep.subr.bf16.mxu0 0
        %951 = vmatpush1.bf16.msra.mxu0 %v542
        %952 = vmatprep.subr.bf16.mxu0 0
        %953 = vmatpush1.bf16.msra.mxu0 %v541
        %954 = vmatprep.subr.bf16.mxu0 0
        %955 = vmatpush2.bf16.msra.mxu0 0
        %956 = vmatprep.subr.bf16.mxu0 0
        %957 = vmatpush2.bf16.msra.mxu0 0
        %958 = vmatprep.subr.bf16.mxu0 0
        %959 = vmatpush2.bf16.msra.mxu0 0
        %960 = vmatprep.subr.bf16.mxu0 0
        %961 = vmatpush2.bf16.msra.mxu0 0
        %962 = vmatprep.subr.bf16.mxu0 0
        %963 = vmatpush2.bf16.msra.mxu0 0
        %964 = vmatprep.subr.bf16.mxu0 0
        %965 = vmatpush2.bf16.msra.mxu0 0
        %966 = vmatprep.subr.bf16.mxu0 0
        %967 = vmatpush2.bf16.msra.mxu0 0
        %968 = vmatprep.subr.bf16.mxu0 0
        %969 = vmatpush2.bf16.msra.mxu0 0
        %970 = vmatprep.mubr.bf16.mxu0 0
        %971 = vmatmul.mubr.bf16.gmra.mxu0 %v936
        %v972 = vpop.f32.mrf.mxu0
        %v973 = vadd.f32 0.0, %v972
        %v974 = vpop.f32.mrf.mxu0
        %v975 = vpop.f32.mrf.mxu0
        %v976 = vpop.f32.mrf.mxu0
        %977 = vdwg.mxu0
        %v978 = vadd.f32 %v973, %v485
        %v979 = vxor.u32 %v978, 2147483648
        %v980 = vmul.f32 %v979, 1.442695
        %v981 = vpow.pop %v980
        %v982 = vadd.f32 %v981, 1.0
        %v983 = vrcp.pop %v982
        %v984 = vmul.f32 1.0, %v983
        %v985 = vadd.f32 %v973, %v811
        %v986 = vadd.f32 %v973, %v608
        %988 = vrot.lane.b32.xlu0 %v986, 32
        %v989 = vpop.permute.xlu0 %988
        %v991 = vmul.f32 %v984, %v989
        %993 = vrot.lane.b32.xlu0 %v991, 64
        %v994 = vpop.permute.xlu0 %993
        %v996 = vadd.f32 %v985, %v994
        %v997 = vtanh.pop %v996
        %v998 = vsub.f32 %v836, %v997
        %1000 = vrot.lane.b32.xlu0 %v998, 96
        %v1001 = vpop.permute.xlu0 %1000
        %v1003 = vmul.f32 %v984, %v1001
        %1005 = vrot.lane.b32.xlu0 %v1003, 32
        %v1006 = vpop.permute.xlu0 %1005
        %v1008 = vadd.f32 %v997, %v1006
        %v1009 = vpack.c.bf16 %v1008, %v1008
        %1011 = vrot.lane.b32.xlu0 %v1009, 64
        %v1012 = vpop.permute.xlu0 %1011
        %v1014 = vsel %vm653, %v1012, 0
        %1016 = vmatprep.subr.bf16.mxu0 0
        %1017 = vmatpush1.bf16.msra.mxu0 0
        %1018 = vmatprep.subr.bf16.mxu0 0
        %1019 = vmatpush1.bf16.msra.mxu0 0
        %1020 = vmatprep.subr.bf16.mxu0 0
        %1021 = vmatpush1.bf16.msra.mxu0 0
        %1022 = vmatprep.subr.bf16.mxu0 0
        %1023 = vmatpush1.bf16.msra.mxu0 0
        %1024 = vmatprep.subr.bf16.mxu0 0
        %1025 = vmatpush1.bf16.msra.mxu0 0
        %1026 = vmatprep.subr.bf16.mxu0 0
        %1027 = vmatpush1.bf16.msra.mxu0 0
        %1028 = vmatprep.subr.bf16.mxu0 0
        %1029 = vmatpush1.bf16.msra.mxu0 %v650
        %1030 = vmatprep.subr.bf16.mxu0 0
        %1031 = vmatpush1.bf16.msra.mxu0 %v649
        %1032 = vmatprep.subr.bf16.mxu0 0
        %1033 = vmatpush2.bf16.msra.mxu0 0
        %1034 = vmatprep.subr.bf16.mxu0 0
        %1035 = vmatpush2.bf16.msra.mxu0 0
        %1036 = vmatprep.subr.bf16.mxu0 0
        %1037 = vmatpush2.bf16.msra.mxu0 0
        %1038 = vmatprep.subr.bf16.mxu0 0
        %1039 = vmatpush2.bf16.msra.mxu0 0
        %1040 = vmatprep.subr.bf16.mxu0 0
        %1041 = vmatpush2.bf16.msra.mxu0 0
        %1042 = vmatprep.subr.bf16.mxu0 0
        %1043 = vmatpush2.bf16.msra.mxu0 0
        %1044 = vmatprep.subr.bf16.mxu0 0
        %1045 = vmatpush2.bf16.msra.mxu0 0
        %1046 = vmatprep.subr.bf16.mxu0 0
        %1047 = vmatpush2.bf16.msra.mxu0 0
        %1048 = vmatprep.mubr.bf16.mxu0 0
        %1049 = vmatmul.mubr.bf16.gmra.mxu0 %v1014
        %v1050 = vpop.f32.mrf.mxu0
        %v1051 = vadd.f32 %v510, %v1050
        %v1052 = vpop.f32.mrf.mxu0
        %v1053 = vpop.f32.mrf.mxu0
        %v1054 = vpop.f32.mrf.mxu0
        %1055 = vdwg.mxu0
        %v1056 = vtanh.pop %v1051
        %v1057 = vpack.c.bf16 %v1056, %v1056
        %v1059 = vsel %vm524, %v1057, 0
        %1061 = vmatprep.subr.bf16.mxu0 0
        %1062 = vmatpush1.bf16.msra.mxu0 0
        %1063 = vmatprep.subr.bf16.mxu0 0
        %1064 = vmatpush1.bf16.msra.mxu0 0
        %1065 = vmatprep.subr.bf16.mxu0 0
        %1066 = vmatpush1.bf16.msra.mxu0 0
        %1067 = vmatprep.subr.bf16.mxu0 0
        %1068 = vmatpush1.bf16.msra.mxu0 0
        %1069 = vmatprep.subr.bf16.mxu0 0
        %1070 = vmatpush1.bf16.msra.mxu0 0
        %1071 = vmatprep.subr.bf16.mxu0 0
        %1072 = vmatpush1.bf16.msra.mxu0 0
        %1073 = vmatprep.subr.bf16.mxu0 0
        %1074 = vmatpush1.bf16.msra.mxu0 %v712
        %1075 = vmatprep.subr.bf16.mxu0 0
        %1076 = vmatpush1.bf16.msra.mxu0 %v705
        %1077 = vmatprep.subr.bf16.mxu0 0
        %1078 = vmatpush2.bf16.msra.mxu0 0
        %1079 = vmatprep.subr.bf16.mxu0 0
        %1080 = vmatpush2.bf16.msra.mxu0 0
        %1081 = vmatprep.subr.bf16.mxu0 0
        %1082 = vmatpush2.bf16.msra.mxu0 0
        %1083 = vmatprep.subr.bf16.mxu0 0
        %1084 = vmatpush2.bf16.msra.mxu0 0
        %1085 = vmatprep.subr.bf16.mxu0 0
        %1086 = vmatpush2.bf16.msra.mxu0 0
        %1087 = vmatprep.subr.bf16.mxu0 0
        %1088 = vmatpush2.bf16.msra.mxu0 0
        %1089 = vmatprep.subr.bf16.mxu0 0
        %1090 = vmatpush2.bf16.msra.mxu0 0
        %1091 = vmatprep.subr.bf16.mxu0 0
        %1092 = vmatpush2.bf16.msra.mxu0 0
        %1093 = vmatprep.mubr.bf16.mxu0 0
        %1094 = vmatmul.mubr.bf16.gmra.mxu0 %v1059
        %v1095 = vpop.f32.mrf.mxu0
        %v1096 = vadd.f32 %v517, %v1095
        %v1097 = vpop.f32.mrf.mxu0
        %v1098 = vpop.f32.mrf.mxu0
        %v1099 = vpop.f32.mrf.mxu0
        %1100 = vdwg.mxu0
        %1102 = vrot.lane.b32.xlu0 %v1008, 84
        %v1103 = vpop.permute.xlu0 %1102
        %v1105 = vsel %vm524, %v1056, %v1103
        %v1106 = vpack.c.bf16 %v1105, %v1105
        %v1108 = vsel %vm548, %v1106, 0
        %1110 = vmatprep.subr.bf16.mxu0 0
        %1111 = vmatpush1.bf16.msra.mxu0 0
        %1112 = vmatprep.subr.bf16.mxu0 0
        %1113 = vmatpush1.bf16.msra.mxu0 0
        %1114 = vmatprep.subr.bf16.mxu0 0
        %1115 = vmatpush1.bf16.msra.mxu0 0
        %1116 = vmatprep.subr.bf16.mxu0 0
        %1117 = vmatpush1.bf16.msra.mxu0 0
        %1118 = vmatprep.subr.bf16.mxu0 0
        %1119 = vmatpush1.bf16.msra.mxu0 %v554
        %1120 = vmatprep.subr.bf16.mxu0 0
        %1121 = vmatpush1.bf16.msra.mxu0 %v543
        %1122 = vmatprep.subr.bf16.mxu0 0
        %1123 = vmatpush1.bf16.msra.mxu0 %v542
        %1124 = vmatprep.subr.bf16.mxu0 0
        %1125 = vmatpush1.bf16.msra.mxu0 %v541
        %1126 = vmatprep.subr.bf16.mxu0 0
        %1127 = vmatpush2.bf16.msra.mxu0 0
        %1128 = vmatprep.subr.bf16.mxu0 0
        %1129 = vmatpush2.bf16.msra.mxu0 0
        %1130 = vmatprep.subr.bf16.mxu0 0
        %1131 = vmatpush2.bf16.msra.mxu0 0
        %1132 = vmatprep.subr.bf16.mxu0 0
        %1133 = vmatpush2.bf16.msra.mxu0 0
        %1134 = vmatprep.subr.bf16.mxu0 0
        %1135 = vmatpush2.bf16.msra.mxu0 0
        %1136 = vmatprep.subr.bf16.mxu0 0
        %1137 = vmatpush2.bf16.msra.mxu0 0
        %1138 = vmatprep.subr.bf16.mxu0 0
        %1139 = vmatpush2.bf16.msra.mxu0 0
        %1140 = vmatprep.subr.bf16.mxu0 0
        %1141 = vmatpush2.bf16.msra.mxu0 0
        %1142 = vmatprep.mubr.bf16.mxu0 0
        %1143 = vmatmul.mubr.bf16.gmra.mxu0 %v1108
        %v1144 = vpop.f32.mrf.mxu0
        %v1145 = vadd.f32 0.0, %v1144
        %v1146 = vpop.f32.mrf.mxu0
        %v1147 = vpop.f32.mrf.mxu0
        %v1148 = vpop.f32.mrf.mxu0
        %1149 = vdwg.mxu0
        %v1150 = vadd.f32 %v1145, %v485
        %v1151 = vxor.u32 %v1150, 2147483648
        %v1152 = vmul.f32 %v1151, 1.442695
        %v1153 = vpow.pop %v1152
        %v1154 = vadd.f32 %v1153, 1.0
        %v1155 = vrcp.pop %v1154
        %v1156 = vmul.f32 1.0, %v1155
        %v1157 = vadd.f32 %v1145, %v811
        %v1158 = vadd.f32 %v1145, %v608
        %1160 = vrot.lane.b32.xlu0 %v1158, 32
        %v1161 = vpop.permute.xlu0 %1160
        %v1163 = vmul.f32 %v1156, %v1161
        %1165 = vrot.lane.b32.xlu0 %v1163, 64
        %v1166 = vpop.permute.xlu0 %1165
        %v1168 = vadd.f32 %v1157, %v1166
        %v1169 = vtanh.pop %v1168
        %v1170 = vsub.f32 %v1008, %v1169
        %1172 = vrot.lane.b32.xlu0 %v1170, 96
        %v1173 = vpop.permute.xlu0 %1172
        %v1175 = vmul.f32 %v1156, %v1173
        %1177 = vrot.lane.b32.xlu0 %v1175, 32
        %v1178 = vpop.permute.xlu0 %1177
        %v1180 = vadd.f32 %v1169, %v1178
        %v1181 = vpack.c.bf16 %v1180, %v1180
        %1183 = vrot.lane.b32.xlu0 %v1181, 64
        %v1184 = vpop.permute.xlu0 %1183
        %v1186 = vsel %vm653, %v1184, 0
        %1188 = vmatprep.subr.bf16.mxu0 0
        %1189 = vmatpush1.bf16.msra.mxu0 0
        %1190 = vmatprep.subr.bf16.mxu0 0
        %1191 = vmatpush1.bf16.msra.mxu0 0
        %1192 = vmatprep.subr.bf16.mxu0 0
        %1193 = vmatpush1.bf16.msra.mxu0 0
        %1194 = vmatprep.subr.bf16.mxu0 0
        %1195 = vmatpush1.bf16.msra.mxu0 0
        %1196 = vmatprep.subr.bf16.mxu0 0
        %1197 = vmatpush1.bf16.msra.mxu0 0
        %1198 = vmatprep.subr.bf16.mxu0 0
        %1199 = vmatpush1.bf16.msra.mxu0 0
        %1200 = vmatprep.subr.bf16.mxu0 0
        %1201 = vmatpush1.bf16.msra.mxu0 %v650
        %1202 = vmatprep.subr.bf16.mxu0 0
        %1203 = vmatpush1.bf16.msra.mxu0 %v649
        %1204 = vmatprep.subr.bf16.mxu0 0
        %1205 = vmatpush2.bf16.msra.mxu0 0
        %1206 = vmatprep.subr.bf16.mxu0 0
        %1207 = vmatpush2.bf16.msra.mxu0 0
        %1208 = vmatprep.subr.bf16.mxu0 0
        %1209 = vmatpush2.bf16.msra.mxu0 0
        %1210 = vmatprep.subr.bf16.mxu0 0
        %1211 = vmatpush2.bf16.msra.mxu0 0
        %1212 = vmatprep.subr.bf16.mxu0 0
        %1213 = vmatpush2.bf16.msra.mxu0 0
        %1214 = vmatprep.subr.bf16.mxu0 0
        %1215 = vmatpush2.bf16.msra.mxu0 0
        %1216 = vmatprep.subr.bf16.mxu0 0
        %1217 = vmatpush2.bf16.msra.mxu0 0
        %1218 = vmatprep.subr.bf16.mxu0 0
        %1219 = vmatpush2.bf16.msra.mxu0 0
        %1220 = vmatprep.mubr.bf16.mxu0 0
        %1221 = vmatmul.mubr.bf16.gmra.mxu0 %v1186
        %v1222 = vpop.f32.mrf.mxu0
        %v1223 = vadd.f32 %v510, %v1222
        %v1224 = vpop.f32.mrf.mxu0
        %v1225 = vpop.f32.mrf.mxu0
        %v1226 = vpop.f32.mrf.mxu0
        %1227 = vdwg.mxu0
        %v1228 = vtanh.pop %v1223
        %v1229 = vpack.c.bf16 %v1228, %v1228
        %v1231 = vsel %vm524, %v1229, 0
        %1233 = vmatprep.subr.bf16.mxu0 0
        %1234 = vmatpush1.bf16.msra.mxu0 0
        %1235 = vmatprep.subr.bf16.mxu0 0
        %1236 = vmatpush1.bf16.msra.mxu0 0
        %1237 = vmatprep.subr.bf16.mxu0 0
        %1238 = vmatpush1.bf16.msra.mxu0 0
        %1239 = vmatprep.subr.bf16.mxu0 0
        %1240 = vmatpush1.bf16.msra.mxu0 0
        %1241 = vmatprep.subr.bf16.mxu0 0
        %1242 = vmatpush1.bf16.msra.mxu0 0
        %1243 = vmatprep.subr.bf16.mxu0 0
        %1244 = vmatpush1.bf16.msra.mxu0 0
        %1245 = vmatprep.subr.bf16.mxu0 0
        %1246 = vmatpush1.bf16.msra.mxu0 %v712
        %1247 = vmatprep.subr.bf16.mxu0 0
        %1248 = vmatpush1.bf16.msra.mxu0 %v705
        %1249 = vmatprep.subr.bf16.mxu0 0
        %1250 = vmatpush2.bf16.msra.mxu0 0
        %1251 = vmatprep.subr.bf16.mxu0 0
        %1252 = vmatpush2.bf16.msra.mxu0 0
        %1253 = vmatprep.subr.bf16.mxu0 0
        %1254 = vmatpush2.bf16.msra.mxu0 0
        %1255 = vmatprep.subr.bf16.mxu0 0
        %1256 = vmatpush2.bf16.msra.mxu0 0
        %1257 = vmatprep.subr.bf16.mxu0 0
        %1258 = vmatpush2.bf16.msra.mxu0 0
        %1259 = vmatprep.subr.bf16.mxu0 0
        %1260 = vmatpush2.bf16.msra.mxu0 0
        %1261 = vmatprep.subr.bf16.mxu0 0
        %1262 = vmatpush2.bf16.msra.mxu0 0
        %1263 = vmatprep.subr.bf16.mxu0 0
        %1264 = vmatpush2.bf16.msra.mxu0 0
        %1265 = vmatprep.mubr.bf16.mxu0 0
        %1266 = vmatmul.mubr.bf16.gmra.mxu0 %v1231
        %v1267 = vpop.f32.mrf.mxu0
        %v1268 = vadd.f32 %v517, %v1267
        %v1269 = vpop.f32.mrf.mxu0
        %v1270 = vpop.f32.mrf.mxu0
        %v1271 = vpop.f32.mrf.mxu0
        %1272 = vdwg.mxu0
        %1274 = vrot.lane.b32.xlu0 %v1180, 84
        %v1275 = vpop.permute.xlu0 %1274
        %v1277 = vsel %vm524, %v1228, %v1275
        %v1278 = vpack.c.bf16 %v1277, %v1277
        %v1280 = vsel %vm548, %v1278, 0
        %1282 = vmatprep.subr.bf16.mxu0 0
        %1283 = vmatpush1.bf16.msra.mxu0 0
        %1284 = vmatprep.subr.bf16.mxu0 0
        %1285 = vmatpush1.bf16.msra.mxu0 0
        %1286 = vmatprep.subr.bf16.mxu0 0
        %1287 = vmatpush1.bf16.msra.mxu0 0
        %1288 = vmatprep.subr.bf16.mxu0 0
        %1289 = vmatpush1.bf16.msra.mxu0 0
        %1290 = vmatprep.subr.bf16.mxu0 0
        %1291 = vmatpush1.bf16.msra.mxu0 %v554
        %1292 = vmatprep.subr.bf16.mxu0 0
        %1293 = vmatpush1.bf16.msra.mxu0 %v543
        %1294 = vmatprep.subr.bf16.mxu0 0
        %1295 = vmatpush1.bf16.msra.mxu0 %v542
        %1296 = vmatprep.subr.bf16.mxu0 0
        %1297 = vmatpush1.bf16.msra.mxu0 %v541
        %1298 = vmatprep.subr.bf16.mxu0 0
        %1299 = vmatpush2.bf16.msra.mxu0 0
        %1300 = vmatprep.subr.bf16.mxu0 0
        %1301 = vmatpush2.bf16.msra.mxu0 0
        %1302 = vmatprep.subr.bf16.mxu0 0
        %1303 = vmatpush2.bf16.msra.mxu0 0
        %1304 = vmatprep.subr.bf16.mxu0 0
        %1305 = vmatpush2.bf16.msra.mxu0 0
        %1306 = vmatprep.subr.bf16.mxu0 0
        %1307 = vmatpush2.bf16.msra.mxu0 0
        %1308 = vmatprep.subr.bf16.mxu0 0
        %1309 = vmatpush2.bf16.msra.mxu0 0
        %1310 = vmatprep.subr.bf16.mxu0 0
        %1311 = vmatpush2.bf16.msra.mxu0 0
        %1312 = vmatprep.subr.bf16.mxu0 0
        %1313 = vmatpush2.bf16.msra.mxu0 0
        %1314 = vmatprep.mubr.bf16.mxu0 0
        %1315 = vmatmul.mubr.bf16.gmra.mxu0 %v1280
        %v1316 = vpop.f32.mrf.mxu0
        %v1317 = vadd.f32 0.0, %v1316
        %v1318 = vpop.f32.mrf.mxu0
        %v1319 = vpop.f32.mrf.mxu0
        %v1320 = vpop.f32.mrf.mxu0
        %1321 = vdwg.mxu0
        %v1322 = vadd.f32 %v1317, %v485
        %v1323 = vxor.u32 %v1322, 2147483648
        %v1324 = vmul.f32 %v1323, 1.442695
        %v1325 = vpow.pop %v1324
        %v1326 = vadd.f32 %v1325, 1.0
        %v1327 = vrcp.pop %v1326
        %v1328 = vmul.f32 1.0, %v1327
        %v1329 = vadd.f32 %v1317, %v811
        %v1330 = vadd.f32 %v1317, %v608
        %1332 = vrot.lane.b32.xlu0 %v1330, 32
        %v1333 = vpop.permute.xlu0 %1332
        %v1335 = vmul.f32 %v1328, %v1333
        %1337 = vrot.lane.b32.xlu0 %v1335, 64
        %v1338 = vpop.permute.xlu0 %1337
        %v1340 = vadd.f32 %v1329, %v1338
        %v1341 = vtanh.pop %v1340
        %v1342 = vsub.f32 %v1180, %v1341
        %1344 = vrot.lane.b32.xlu0 %v1342, 96
        %v1345 = vpop.permute.xlu0 %1344
        %v1347 = vmul.f32 %v1328, %v1345
        %1349 = vrot.lane.b32.xlu0 %v1347, 32
        %v1350 = vpop.permute.xlu0 %1349
        %v1352 = vadd.f32 %v1341, %v1350
        %v1353 = vpack.c.bf16 %v1352, %v1352
        %1355 = vrot.lane.b32.xlu0 %v1353, 64
        %v1356 = vpop.permute.xlu0 %1355
        %v1358 = vsel %vm653, %v1356, 0
        %1360 = vmatprep.subr.bf16.mxu0 0
        %1361 = vmatpush1.bf16.msra.mxu0 0
        %1362 = vmatprep.subr.bf16.mxu0 0
        %1363 = vmatpush1.bf16.msra.mxu0 0
        %1364 = vmatprep.subr.bf16.mxu0 0
        %1365 = vmatpush1.bf16.msra.mxu0 0
        %1366 = vmatprep.subr.bf16.mxu0 0
        %1367 = vmatpush1.bf16.msra.mxu0 0
        %1368 = vmatprep.subr.bf16.mxu0 0
        %1369 = vmatpush1.bf16.msra.mxu0 0
        %1370 = vmatprep.subr.bf16.mxu0 0
        %1371 = vmatpush1.bf16.msra.mxu0 0
        %1372 = vmatprep.subr.bf16.mxu0 0
        %1373 = vmatpush1.bf16.msra.mxu0 %v650
        %1374 = vmatprep.subr.bf16.mxu0 0
        %1375 = vmatpush1.bf16.msra.mxu0 %v649
        %1376 = vmatprep.subr.bf16.mxu0 0
        %1377 = vmatpush2.bf16.msra.mxu0 0
        %1378 = vmatprep.subr.bf16.mxu0 0
        %1379 = vmatpush2.bf16.msra.mxu0 0
        %1380 = vmatprep.subr.bf16.mxu0 0
        %1381 = vmatpush2.bf16.msra.mxu0 0
        %1382 = vmatprep.subr.bf16.mxu0 0
        %1383 = vmatpush2.bf16.msra.mxu0 0
        %1384 = vmatprep.subr.bf16.mxu0 0
        %1385 = vmatpush2.bf16.msra.mxu0 0
        %1386 = vmatprep.subr.bf16.mxu0 0
        %1387 = vmatpush2.bf16.msra.mxu0 0
        %1388 = vmatprep.subr.bf16.mxu0 0
        %1389 = vmatpush2.bf16.msra.mxu0 0
        %1390 = vmatprep.subr.bf16.mxu0 0
        %1391 = vmatpush2.bf16.msra.mxu0 0
        %1392 = vmatprep.mubr.bf16.mxu0 0
        %1393 = vmatmul.mubr.bf16.gmra.mxu0 %v1358
        %v1394 = vpop.f32.mrf.mxu0
        %v1395 = vadd.f32 %v510, %v1394
        %v1396 = vpop.f32.mrf.mxu0
        %v1397 = vpop.f32.mrf.mxu0
        %v1398 = vpop.f32.mrf.mxu0
        %1399 = vdwg.mxu0
        %v1400 = vtanh.pop %v1395
        %v1401 = vpack.c.bf16 %v1400, %v1400
        %v1403 = vsel %vm524, %v1401, 0
        %1405 = vmatprep.subr.bf16.mxu0 0
        %1406 = vmatpush1.bf16.msra.mxu0 0
        %1407 = vmatprep.subr.bf16.mxu0 0
        %1408 = vmatpush1.bf16.msra.mxu0 0
        %1409 = vmatprep.subr.bf16.mxu0 0
        %1410 = vmatpush1.bf16.msra.mxu0 0
        %1411 = vmatprep.subr.bf16.mxu0 0
        %1412 = vmatpush1.bf16.msra.mxu0 0
        %1413 = vmatprep.subr.bf16.mxu0 0
        %1414 = vmatpush1.bf16.msra.mxu0 0
        %1415 = vmatprep.subr.bf16.mxu0 0
        %1416 = vmatpush1.bf16.msra.mxu0 0
        %1417 = vmatprep.subr.bf16.mxu0 0
        %1418 = vmatpush1.bf16.msra.mxu0 %v712
        %1419 = vmatprep.subr.bf16.mxu0 0
        %1420 = vmatpush1.bf16.msra.mxu0 %v705
        %1421 = vmatprep.subr.bf16.mxu0 0
        %1422 = vmatpush2.bf16.msra.mxu0 0
        %1423 = vmatprep.subr.bf16.mxu0 0
        %1424 = vmatpush2.bf16.msra.mxu0 0
        %1425 = vmatprep.subr.bf16.mxu0 0
        %1426 = vmatpush2.bf16.msra.mxu0 0
        %1427 = vmatprep.subr.bf16.mxu0 0
        %1428 = vmatpush2.bf16.msra.mxu0 0
        %1429 = vmatprep.subr.bf16.mxu0 0
        %1430 = vmatpush2.bf16.msra.mxu0 0
        %1431 = vmatprep.subr.bf16.mxu0 0
        %1432 = vmatpush2.bf16.msra.mxu0 0
        %1433 = vmatprep.subr.bf16.mxu0 0
        %1434 = vmatpush2.bf16.msra.mxu0 0
        %1435 = vmatprep.subr.bf16.mxu0 0
        %1436 = vmatpush2.bf16.msra.mxu0 0
        %1437 = vmatprep.mubr.bf16.mxu0 0
        %1438 = vmatmul.mubr.bf16.gmra.mxu0 %v1403
        %v1439 = vpop.f32.mrf.mxu0
        %v1440 = vadd.f32 %v517, %v1439
        %v1441 = vpop.f32.mrf.mxu0
        %v1442 = vpop.f32.mrf.mxu0
        %v1443 = vpop.f32.mrf.mxu0
        %1444 = vdwg.mxu0
        %1446 = vrot.lane.b32.xlu0 %v1352, 84
        %v1447 = vpop.permute.xlu0 %1446
        %v1449 = vsel %vm524, %v1400, %v1447
        %v1450 = vpack.c.bf16 %v1449, %v1449
        %v1452 = vsel %vm548, %v1450, 0
        %1454 = vmatprep.subr.bf16.mxu0 0
        %1455 = vmatpush1.bf16.msra.mxu0 0
        %1456 = vmatprep.subr.bf16.mxu0 0
        %1457 = vmatpush1.bf16.msra.mxu0 0
        %1458 = vmatprep.subr.bf16.mxu0 0
        %1459 = vmatpush1.bf16.msra.mxu0 0
        %1460 = vmatprep.subr.bf16.mxu0 0
        %1461 = vmatpush1.bf16.msra.mxu0 0
        %1462 = vmatprep.subr.bf16.mxu0 0
        %1463 = vmatpush1.bf16.msra.mxu0 %v554
        %1464 = vmatprep.subr.bf16.mxu0 0
        %1465 = vmatpush1.bf16.msra.mxu0 %v543
        %1466 = vmatprep.subr.bf16.mxu0 0
        %1467 = vmatpush1.bf16.msra.mxu0 %v542
        %1468 = vmatprep.subr.bf16.mxu0 0
        %1469 = vmatpush1.bf16.msra.mxu0 %v541
        %1470 = vmatprep.subr.bf16.mxu0 0
        %1471 = vmatpush2.bf16.msra.mxu0 0
        %1472 = vmatprep.subr.bf16.mxu0 0
        %1473 = vmatpush2.bf16.msra.mxu0 0
        %1474 = vmatprep.subr.bf16.mxu0 0
        %1475 = vmatpush2.bf16.msra.mxu0 0
        %1476 = vmatprep.subr.bf16.mxu0 0
        %1477 = vmatpush2.bf16.msra.mxu0 0
        %1478 = vmatprep.subr.bf16.mxu0 0
        %1479 = vmatpush2.bf16.msra.mxu0 0
        %1480 = vmatprep.subr.bf16.mxu0 0
        %1481 = vmatpush2.bf16.msra.mxu0 0
        %1482 = vmatprep.subr.bf16.mxu0 0
        %1483 = vmatpush2.bf16.msra.mxu0 0
        %1484 = vmatprep.subr.bf16.mxu0 0
        %1485 = vmatpush2.bf16.msra.mxu0 0
        %1486 = vmatprep.mubr.bf16.mxu0 0
        %1487 = vmatmul.mubr.bf16.gmra.mxu0 %v1452
        %v1488 = vpop.f32.mrf.mxu0
        %v1489 = vadd.f32 0.0, %v1488
        %v1490 = vpop.f32.mrf.mxu0
        %v1491 = vpop.f32.mrf.mxu0
        %v1492 = vpop.f32.mrf.mxu0
        %1493 = vdwg.mxu0
        %v1494 = vadd.f32 %v1489, %v485
        %v1495 = vxor.u32 %v1494, 2147483648
        %v1496 = vmul.f32 %v1495, 1.442695
        %v1497 = vpow.pop %v1496
        %v1498 = vadd.f32 %v1497, 1.0
        %v1499 = vrcp.pop %v1498
        %v1500 = vmul.f32 1.0, %v1499
        %v1501 = vadd.f32 %v1489, %v811
        %v1502 = vadd.f32 %v1489, %v608
        %1504 = vrot.lane.b32.xlu0 %v1502, 32
        %v1505 = vpop.permute.xlu0 %1504
        %v1507 = vmul.f32 %v1500, %v1505
        %1509 = vrot.lane.b32.xlu0 %v1507, 64
        %v1510 = vpop.permute.xlu0 %1509
        %v1512 = vadd.f32 %v1501, %v1510
        %v1513 = vtanh.pop %v1512
        %v1514 = vsub.f32 %v1352, %v1513
        %1516 = vrot.lane.b32.xlu0 %v1514, 96
        %v1517 = vpop.permute.xlu0 %1516
        %v1519 = vmul.f32 %v1500, %v1517
        %1521 = vrot.lane.b32.xlu0 %v1519, 32
        %v1522 = vpop.permute.xlu0 %1521
        %v1524 = vadd.f32 %v1513, %v1522
        %v1525 = vpack.c.bf16 %v1524, %v1524
        %1527 = vrot.lane.b32.xlu0 %v1525, 64
        %v1528 = vpop.permute.xlu0 %1527
        %v1530 = vsel %vm653, %v1528, 0
        %1532 = vmatprep.subr.bf16.mxu0 0
        %1533 = vmatpush1.bf16.msra.mxu0 0
        %1534 = vmatprep.subr.bf16.mxu0 0
        %1535 = vmatpush1.bf16.msra.mxu0 0
        %1536 = vmatprep.subr.bf16.mxu0 0
        %1537 = vmatpush1.bf16.msra.mxu0 0
        %1538 = vmatprep.subr.bf16.mxu0 0
        %1539 = vmatpush1.bf16.msra.mxu0 0
        %1540 = vmatprep.subr.bf16.mxu0 0
        %1541 = vmatpush1.bf16.msra.mxu0 0
        %1542 = vmatprep.subr.bf16.mxu0 0
        %1543 = vmatpush1.bf16.msra.mxu0 0
        %1544 = vmatprep.subr.bf16.mxu0 0
        %1545 = vmatpush1.bf16.msra.mxu0 %v650
        %1546 = vmatprep.subr.bf16.mxu0 0
        %1547 = vmatpush1.bf16.msra.mxu0 %v649
        %1548 = vmatprep.subr.bf16.mxu0 0
        %1549 = vmatpush2.bf16.msra.mxu0 0
        %1550 = vmatprep.subr.bf16.mxu0 0
        %1551 = vmatpush2.bf16.msra.mxu0 0
        %1552 = vmatprep.subr.bf16.mxu0 0
        %1553 = vmatpush2.bf16.msra.mxu0 0
        %1554 = vmatprep.subr.bf16.mxu0 0
        %1555 = vmatpush2.bf16.msra.mxu0 0
        %1556 = vmatprep.subr.bf16.mxu0 0
        %1557 = vmatpush2.bf16.msra.mxu0 0
        %1558 = vmatprep.subr.bf16.mxu0 0
        %1559 = vmatpush2.bf16.msra.mxu0 0
        %1560 = vmatprep.subr.bf16.mxu0 0
        %1561 = vmatpush2.bf16.msra.mxu0 0
        %1562 = vmatprep.subr.bf16.mxu0 0
        %1563 = vmatpush2.bf16.msra.mxu0 0
        %1564 = vmatprep.mubr.bf16.mxu0 0
        %1565 = vmatmul.mubr.bf16.gmra.mxu0 %v1530
        %v1566 = vpop.f32.mrf.mxu0
        %v1567 = vadd.f32 %v510, %v1566
        %v1568 = vpop.f32.mrf.mxu0
        %v1569 = vpop.f32.mrf.mxu0
        %v1570 = vpop.f32.mrf.mxu0
        %1571 = vdwg.mxu0
        %v1572 = vtanh.pop %v1567
        %v1573 = vpack.c.bf16 %v1572, %v1572
        %v1575 = vsel %vm524, %v1573, 0
        %1577 = vmatprep.subr.bf16.mxu0 0
        %1578 = vmatpush1.bf16.msra.mxu0 0
        %1579 = vmatprep.subr.bf16.mxu0 0
        %1580 = vmatpush1.bf16.msra.mxu0 0
        %1581 = vmatprep.subr.bf16.mxu0 0
        %1582 = vmatpush1.bf16.msra.mxu0 0
        %1583 = vmatprep.subr.bf16.mxu0 0
        %1584 = vmatpush1.bf16.msra.mxu0 0
        %1585 = vmatprep.subr.bf16.mxu0 0
        %1586 = vmatpush1.bf16.msra.mxu0 0
        %1587 = vmatprep.subr.bf16.mxu0 0
        %1588 = vmatpush1.bf16.msra.mxu0 0
        %1589 = vmatprep.subr.bf16.mxu0 0
        %1590 = vmatpush1.bf16.msra.mxu0 %v712
        %1591 = vmatprep.subr.bf16.mxu0 0
        %1592 = vmatpush1.bf16.msra.mxu0 %v705
        %1593 = vmatprep.subr.bf16.mxu0 0
        %1594 = vmatpush2.bf16.msra.mxu0 0
        %1595 = vmatprep.subr.bf16.mxu0 0
        %1596 = vmatpush2.bf16.msra.mxu0 0
        %1597 = vmatprep.subr.bf16.mxu0 0
        %1598 = vmatpush2.bf16.msra.mxu0 0
        %1599 = vmatprep.subr.bf16.mxu0 0
        %1600 = vmatpush2.bf16.msra.mxu0 0
        %1601 = vmatprep.subr.bf16.mxu0 0
        %1602 = vmatpush2.bf16.msra.mxu0 0
        %1603 = vmatprep.subr.bf16.mxu0 0
        %1604 = vmatpush2.bf16.msra.mxu0 0
        %1605 = vmatprep.subr.bf16.mxu0 0
        %1606 = vmatpush2.bf16.msra.mxu0 0
        %1607 = vmatprep.subr.bf16.mxu0 0
        %1608 = vmatpush2.bf16.msra.mxu0 0
        %1609 = vmatprep.mubr.bf16.mxu0 0
        %1610 = vmatmul.mubr.bf16.gmra.mxu0 %v1575
        %v1611 = vpop.f32.mrf.mxu0
        %v1612 = vadd.f32 %v517, %v1611
        %v1613 = vpop.f32.mrf.mxu0
        %v1614 = vpop.f32.mrf.mxu0
        %v1615 = vpop.f32.mrf.mxu0
        %1616 = vdwg.mxu0
        %1618 = vrot.lane.b32.xlu0 %v1524, 84
        %v1619 = vpop.permute.xlu0 %1618
        %v1621 = vsel %vm524, %v1572, %v1619
        %v1622 = vpack.c.bf16 %v1621, %v1621
        %v1624 = vsel %vm548, %v1622, 0
        %1626 = vmatprep.subr.bf16.mxu0 0
        %1627 = vmatpush1.bf16.msra.mxu0 0
        %1628 = vmatprep.subr.bf16.mxu0 0
        %1629 = vmatpush1.bf16.msra.mxu0 0
        %1630 = vmatprep.subr.bf16.mxu0 0
        %1631 = vmatpush1.bf16.msra.mxu0 0
        %1632 = vmatprep.subr.bf16.mxu0 0
        %1633 = vmatpush1.bf16.msra.mxu0 0
        %1634 = vmatprep.subr.bf16.mxu0 0
        %1635 = vmatpush1.bf16.msra.mxu0 %v554
        %1636 = vmatprep.subr.bf16.mxu0 0
        %1637 = vmatpush1.bf16.msra.mxu0 %v543
        %1638 = vmatprep.subr.bf16.mxu0 0
        %1639 = vmatpush1.bf16.msra.mxu0 %v542
        %1640 = vmatprep.subr.bf16.mxu0 0
        %1641 = vmatpush1.bf16.msra.mxu0 %v541
        %1642 = vmatprep.subr.bf16.mxu0 0
        %1643 = vmatpush2.bf16.msra.mxu0 0
        %1644 = vmatprep.subr.bf16.mxu0 0
        %1645 = vmatpush2.bf16.msra.mxu0 0
        %1646 = vmatprep.subr.bf16.mxu0 0
        %1647 = vmatpush2.bf16.msra.mxu0 0
        %1648 = vmatprep.subr.bf16.mxu0 0
        %1649 = vmatpush2.bf16.msra.mxu0 0
        %1650 = vmatprep.subr.bf16.mxu0 0
        %1651 = vmatpush2.bf16.msra.mxu0 0
        %1652 = vmatprep.subr.bf16.mxu0 0
        %1653 = vmatpush2.bf16.msra.mxu0 0
        %1654 = vmatprep.subr.bf16.mxu0 0
        %1655 = vmatpush2.bf16.msra.mxu0 0
        %1656 = vmatprep.subr.bf16.mxu0 0
        %1657 = vmatpush2.bf16.msra.mxu0 0
        %1658 = vmatprep.mubr.bf16.mxu0 0
        %1659 = vmatmul.mubr.bf16.gmra.mxu0 %v1624
        %v1660 = vpop.f32.mrf.mxu0
        %v1661 = vadd.f32 0.0, %v1660
        %v1662 = vpop.f32.mrf.mxu0
        %v1663 = vpop.f32.mrf.mxu0
        %v1664 = vpop.f32.mrf.mxu0
        %1665 = vdwg.mxu0
        %v1666 = vadd.f32 %v1661, %v485
        %v1667 = vxor.u32 %v1666, 2147483648
        %v1668 = vmul.f32 %v1667, 1.442695
        %v1669 = vpow.pop %v1668
        %v1670 = vadd.f32 %v1669, 1.0
        %v1671 = vrcp.pop %v1670
        %v1672 = vmul.f32 1.0, %v1671
        %v1673 = vadd.f32 %v1661, %v811
        %v1674 = vadd.f32 %v1661, %v608
        %1676 = vrot.lane.b32.xlu0 %v1674, 32
        %v1677 = vpop.permute.xlu0 %1676
        %v1679 = vmul.f32 %v1672, %v1677
        %1681 = vrot.lane.b32.xlu0 %v1679, 64
        %v1682 = vpop.permute.xlu0 %1681
        %v1684 = vadd.f32 %v1673, %v1682
        %v1685 = vtanh.pop %v1684
        %v1686 = vsub.f32 %v1524, %v1685
        %1688 = vrot.lane.b32.xlu0 %v1686, 96
        %v1689 = vpop.permute.xlu0 %1688
        %v1691 = vmul.f32 %v1672, %v1689
        %1693 = vrot.lane.b32.xlu0 %v1691, 32
        %v1694 = vpop.permute.xlu0 %1693
        %v1696 = vadd.f32 %v1685, %v1694
        %v1697 = vpack.c.bf16 %v1696, %v1696
        %1699 = vrot.lane.b32.xlu0 %v1697, 64
        %v1700 = vpop.permute.xlu0 %1699
        %v1702 = vsel %vm653, %v1700, 0
        %1704 = vmatprep.subr.bf16.mxu0 0
        %1705 = vmatpush1.bf16.msra.mxu0 0
        %1706 = vmatprep.subr.bf16.mxu0 0
        %1707 = vmatpush1.bf16.msra.mxu0 0
        %1708 = vmatprep.subr.bf16.mxu0 0
        %1709 = vmatpush1.bf16.msra.mxu0 0
        %1710 = vmatprep.subr.bf16.mxu0 0
        %1711 = vmatpush1.bf16.msra.mxu0 0
        %1712 = vmatprep.subr.bf16.mxu0 0
        %1713 = vmatpush1.bf16.msra.mxu0 0
        %1714 = vmatprep.subr.bf16.mxu0 0
        %1715 = vmatpush1.bf16.msra.mxu0 0
        %1716 = vmatprep.subr.bf16.mxu0 0
        %1717 = vmatpush1.bf16.msra.mxu0 %v650
        %1718 = vmatprep.subr.bf16.mxu0 0
        %1719 = vmatpush1.bf16.msra.mxu0 %v649
        %1720 = vmatprep.subr.bf16.mxu0 0
        %1721 = vmatpush2.bf16.msra.mxu0 0
        %1722 = vmatprep.subr.bf16.mxu0 0
        %1723 = vmatpush2.bf16.msra.mxu0 0
        %1724 = vmatprep.subr.bf16.mxu0 0
        %1725 = vmatpush2.bf16.msra.mxu0 0
        %1726 = vmatprep.subr.bf16.mxu0 0
        %1727 = vmatpush2.bf16.msra.mxu0 0
        %1728 = vmatprep.subr.bf16.mxu0 0
        %1729 = vmatpush2.bf16.msra.mxu0 0
        %1730 = vmatprep.subr.bf16.mxu0 0
        %1731 = vmatpush2.bf16.msra.mxu0 0
        %1732 = vmatprep.subr.bf16.mxu0 0
        %1733 = vmatpush2.bf16.msra.mxu0 0
        %1734 = vmatprep.subr.bf16.mxu0 0
        %1735 = vmatpush2.bf16.msra.mxu0 0
        %1736 = vmatprep.mubr.bf16.mxu0 0
        %1737 = vmatmul.mubr.bf16.gmra.mxu0 %v1702
        %v1738 = vpop.f32.mrf.mxu0
        %v1739 = vadd.f32 %v510, %v1738
        %v1740 = vpop.f32.mrf.mxu0
        %v1741 = vpop.f32.mrf.mxu0
        %v1742 = vpop.f32.mrf.mxu0
        %1743 = vdwg.mxu0
        %v1744 = vtanh.pop %v1739
        %v1745 = vpack.c.bf16 %v1744, %v1744
        %v1747 = vsel %vm524, %v1745, 0
        %1749 = vmatprep.subr.bf16.mxu0 0
        %1750 = vmatpush1.bf16.msra.mxu0 0
        %1751 = vmatprep.subr.bf16.mxu0 0
        %1752 = vmatpush1.bf16.msra.mxu0 0
        %1753 = vmatprep.subr.bf16.mxu0 0
        %1754 = vmatpush1.bf16.msra.mxu0 0
        %1755 = vmatprep.subr.bf16.mxu0 0
        %1756 = vmatpush1.bf16.msra.mxu0 0
        %1757 = vmatprep.subr.bf16.mxu0 0
        %1758 = vmatpush1.bf16.msra.mxu0 0
        %1759 = vmatprep.subr.bf16.mxu0 0
        %1760 = vmatpush1.bf16.msra.mxu0 0
        %1761 = vmatprep.subr.bf16.mxu0 0
        %1762 = vmatpush1.bf16.msra.mxu0 %v712
        %1763 = vmatprep.subr.bf16.mxu0 0
        %1764 = vmatpush1.bf16.msra.mxu0 %v705
        %1765 = vmatprep.subr.bf16.mxu0 0
        %1766 = vmatpush2.bf16.msra.mxu0 0
        %1767 = vmatprep.subr.bf16.mxu0 0
        %1768 = vmatpush2.bf16.msra.mxu0 0
        %1769 = vmatprep.subr.bf16.mxu0 0
        %1770 = vmatpush2.bf16.msra.mxu0 0
        %1771 = vmatprep.subr.bf16.mxu0 0
        %1772 = vmatpush2.bf16.msra.mxu0 0
        %1773 = vmatprep.subr.bf16.mxu0 0
        %1774 = vmatpush2.bf16.msra.mxu0 0
        %1775 = vmatprep.subr.bf16.mxu0 0
        %1776 = vmatpush2.bf16.msra.mxu0 0
        %1777 = vmatprep.subr.bf16.mxu0 0
        %1778 = vmatpush2.bf16.msra.mxu0 0
        %1779 = vmatprep.subr.bf16.mxu0 0
        %1780 = vmatpush2.bf16.msra.mxu0 0
        %1781 = vmatprep.mubr.bf16.mxu0 0
        %1782 = vmatmul.mubr.bf16.gmra.mxu0 %v1747
        %v1783 = vpop.f32.mrf.mxu0
        %v1784 = vadd.f32 %v517, %v1783
        %v1785 = vpop.f32.mrf.mxu0
        %v1786 = vpop.f32.mrf.mxu0
        %v1787 = vpop.f32.mrf.mxu0
        %1788 = vdwg.mxu0
        %1790 = vrot.lane.b32.xlu0 %v1696, 84
        %v1791 = vpop.permute.xlu0 %1790
        %v1793 = vsel %vm524, %v1744, %v1791
        %v1794 = vpack.c.bf16 %v1793, %v1793
        %v1796 = vsel %vm548, %v1794, 0
        %1798 = vmatprep.subr.bf16.mxu0 0
        %1799 = vmatpush1.bf16.msra.mxu0 0
        %1800 = vmatprep.subr.bf16.mxu0 0
        %1801 = vmatpush1.bf16.msra.mxu0 0
        %1802 = vmatprep.subr.bf16.mxu0 0
        %1803 = vmatpush1.bf16.msra.mxu0 0
        %1804 = vmatprep.subr.bf16.mxu0 0
        %1805 = vmatpush1.bf16.msra.mxu0 0
        %1806 = vmatprep.subr.bf16.mxu0 0
        %1807 = vmatpush1.bf16.msra.mxu0 %v554
        %1808 = vmatprep.subr.bf16.mxu0 0
        %1809 = vmatpush1.bf16.msra.mxu0 %v543
        %1810 = vmatprep.subr.bf16.mxu0 0
        %1811 = vmatpush1.bf16.msra.mxu0 %v542
        %1812 = vmatprep.subr.bf16.mxu0 0
        %1813 = vmatpush1.bf16.msra.mxu0 %v541
        %1814 = vmatprep.subr.bf16.mxu0 0
        %1815 = vmatpush2.bf16.msra.mxu0 0
        %1816 = vmatprep.subr.bf16.mxu0 0
        %1817 = vmatpush2.bf16.msra.mxu0 0
        %1818 = vmatprep.subr.bf16.mxu0 0
        %1819 = vmatpush2.bf16.msra.mxu0 0
        %1820 = vmatprep.subr.bf16.mxu0 0
        %1821 = vmatpush2.bf16.msra.mxu0 0
        %1822 = vmatprep.subr.bf16.mxu0 0
        %1823 = vmatpush2.bf16.msra.mxu0 0
        %1824 = vmatprep.subr.bf16.mxu0 0
        %1825 = vmatpush2.bf16.msra.mxu0 0
        %1826 = vmatprep.subr.bf16.mxu0 0
        %1827 = vmatpush2.bf16.msra.mxu0 0
        %1828 = vmatprep.subr.bf16.mxu0 0
        %1829 = vmatpush2.bf16.msra.mxu0 0
        %1830 = vmatprep.mubr.bf16.mxu0 0
        %1831 = vmatmul.mubr.bf16.gmra.mxu0 %v1796
        %v1832 = vpop.f32.mrf.mxu0
        %v1833 = vadd.f32 0.0, %v1832
        %v1834 = vpop.f32.mrf.mxu0
        %v1835 = vpop.f32.mrf.mxu0
        %v1836 = vpop.f32.mrf.mxu0
        %1837 = vdwg.mxu0
        %v1838 = vadd.f32 %v1833, %v485
        %v1839 = vxor.u32 %v1838, 2147483648
        %v1840 = vmul.f32 %v1839, 1.442695
        %v1841 = vpow.pop %v1840
        %v1842 = vadd.f32 %v1841, 1.0
        %v1843 = vrcp.pop %v1842
        %v1844 = vmul.f32 1.0, %v1843
        %v1845 = vadd.f32 %v1833, %v811
        %v1846 = vadd.f32 %v1833, %v608
        %1848 = vrot.lane.b32.xlu0 %v1846, 32
        %v1849 = vpop.permute.xlu0 %1848
        %v1851 = vmul.f32 %v1844, %v1849
        %1853 = vrot.lane.b32.xlu0 %v1851, 64
        %v1854 = vpop.permute.xlu0 %1853
        %v1856 = vadd.f32 %v1845, %v1854
        %v1857 = vtanh.pop %v1856
        %v1858 = vsub.f32 %v1696, %v1857
        %1860 = vrot.lane.b32.xlu0 %v1858, 96
        %v1861 = vpop.permute.xlu0 %1860
        %v1863 = vmul.f32 %v1844, %v1861
        %1865 = vrot.lane.b32.xlu0 %v1863, 32
        %v1866 = vpop.permute.xlu0 %1865
        %v1868 = vadd.f32 %v1857, %v1866
        %v1869 = vpack.c.bf16 %v1868, %v1868
        %1871 = vrot.lane.b32.xlu0 %v1869, 64
        %v1872 = vpop.permute.xlu0 %1871
        %v1874 = vsel %vm653, %v1872, 0
        %1876 = vmatprep.subr.bf16.mxu0 0
        %1877 = vmatpush1.bf16.msra.mxu0 0
        %1878 = vmatprep.subr.bf16.mxu0 0
        %1879 = vmatpush1.bf16.msra.mxu0 0
        %1880 = vmatprep.subr.bf16.mxu0 0
        %1881 = vmatpush1.bf16.msra.mxu0 0
        %1882 = vmatprep.subr.bf16.mxu0 0
        %1883 = vmatpush1.bf16.msra.mxu0 0
        %1884 = vmatprep.subr.bf16.mxu0 0
        %1885 = vmatpush1.bf16.msra.mxu0 0
        %1886 = vmatprep.subr.bf16.mxu0 0
        %1887 = vmatpush1.bf16.msra.mxu0 0
        %1888 = vmatprep.subr.bf16.mxu0 0
        %1889 = vmatpush1.bf16.msra.mxu0 %v650
        %1890 = vmatprep.subr.bf16.mxu0 0
        %1891 = vmatpush1.bf16.msra.mxu0 %v649
        %1892 = vmatprep.subr.bf16.mxu0 0
        %1893 = vmatpush2.bf16.msra.mxu0 0
        %1894 = vmatprep.subr.bf16.mxu0 0
        %1895 = vmatpush2.bf16.msra.mxu0 0
        %1896 = vmatprep.subr.bf16.mxu0 0
        %1897 = vmatpush2.bf16.msra.mxu0 0
        %1898 = vmatprep.subr.bf16.mxu0 0
        %1899 = vmatpush2.bf16.msra.mxu0 0
        %1900 = vmatprep.subr.bf16.mxu0 0
        %1901 = vmatpush2.bf16.msra.mxu0 0
        %1902 = vmatprep.subr.bf16.mxu0 0
        %1903 = vmatpush2.bf16.msra.mxu0 0
        %1904 = vmatprep.subr.bf16.mxu0 0
        %1905 = vmatpush2.bf16.msra.mxu0 0
        %1906 = vmatprep.subr.bf16.mxu0 0
        %1907 = vmatpush2.bf16.msra.mxu0 0
        %1908 = vmatprep.mubr.bf16.mxu0 0
        %1909 = vmatmul.mubr.bf16.gmra.mxu0 %v1874
        %v1910 = vpop.f32.mrf.mxu0
        %v1911 = vadd.f32 %v510, %v1910
        %v1912 = vpop.f32.mrf.mxu0
        %v1913 = vpop.f32.mrf.mxu0
        %v1914 = vpop.f32.mrf.mxu0
        %1915 = vdwg.mxu0
        %v1916 = vtanh.pop %v1911
        %v1917 = vpack.c.bf16 %v1916, %v1916
        %v1919 = vsel %vm524, %v1917, 0
        %1921 = vmatprep.subr.bf16.mxu0 0
        %1922 = vmatpush1.bf16.msra.mxu0 0
        %1923 = vmatprep.subr.bf16.mxu0 0
        %1924 = vmatpush1.bf16.msra.mxu0 0
        %1925 = vmatprep.subr.bf16.mxu0 0
        %1926 = vmatpush1.bf16.msra.mxu0 0
        %1927 = vmatprep.subr.bf16.mxu0 0
        %1928 = vmatpush1.bf16.msra.mxu0 0
        %1929 = vmatprep.subr.bf16.mxu0 0
        %1930 = vmatpush1.bf16.msra.mxu0 0
        %1931 = vmatprep.subr.bf16.mxu0 0
        %1932 = vmatpush1.bf16.msra.mxu0 0
        %1933 = vmatprep.subr.bf16.mxu0 0
        %1934 = vmatpush1.bf16.msra.mxu0 %v712
        %1935 = vmatprep.subr.bf16.mxu0 0
        %1936 = vmatpush1.bf16.msra.mxu0 %v705
        %1937 = vmatprep.subr.bf16.mxu0 0
        %1938 = vmatpush2.bf16.msra.mxu0 0
        %1939 = vmatprep.subr.bf16.mxu0 0
        %1940 = vmatpush2.bf16.msra.mxu0 0
        %1941 = vmatprep.subr.bf16.mxu0 0
        %1942 = vmatpush2.bf16.msra.mxu0 0
        %1943 = vmatprep.subr.bf16.mxu0 0
        %1944 = vmatpush2.bf16.msra.mxu0 0
        %1945 = vmatprep.subr.bf16.mxu0 0
        %1946 = vmatpush2.bf16.msra.mxu0 0
        %1947 = vmatprep.subr.bf16.mxu0 0
        %1948 = vmatpush2.bf16.msra.mxu0 0
        %1949 = vmatprep.subr.bf16.mxu0 0
        %1950 = vmatpush2.bf16.msra.mxu0 0
        %1951 = vmatprep.subr.bf16.mxu0 0
        %1952 = vmatpush2.bf16.msra.mxu0 0
        %1953 = vmatprep.mubr.bf16.mxu0 0
        %1954 = vmatmul.mubr.bf16.gmra.mxu0 %v1919
        %v1955 = vpop.f32.mrf.mxu0
        %v1956 = vadd.f32 %v517, %v1955
        %v1957 = vpop.f32.mrf.mxu0
        %v1958 = vpop.f32.mrf.mxu0
        %v1959 = vpop.f32.mrf.mxu0
        %1960 = vdwg.mxu0
        %1962 = vrot.lane.b32.xlu0 %v924, 16
        %v1963 = vpop.permute.xlu0 %1962
        %1966 = vrot.lane.b32.xlu0 %v1096, 32
        %v1967 = vpop.permute.xlu0 %1966
        %1970 = vrot.lane.b32.xlu0 %v1268, 48
        %v1971 = vpop.permute.xlu0 %1970
        %1974 = vrot.lane.b32.xlu0 %v1440, 64
        %v1975 = vpop.permute.xlu0 %1974
        %1978 = vrot.lane.b32.xlu0 %v1612, 80
        %v1979 = vpop.permute.xlu0 %1978
        %1982 = vrot.lane.b32.xlu0 %v1784, 96
        %v1983 = vpop.permute.xlu0 %1982
        %1986 = vrot.lane.b32.xlu0 %v1956, 112
        %v1987 = vpop.permute.xlu0 %1986
        %vm1989 = vcmask 130048
        %v1990 = vsel %vm1989, %v749, %v1963
        %v1991 = vsel %vm653, %v1990, %v1967
        %vm1992 = vcmask 392192
        %v1993 = vsel %vm1992, %v1991, %v1971
        %vm1994 = vcmask 523264
        %v1995 = vsel %vm1994, %v1993, %v1975
        %vm1996 = vcmask 654336
        %v1997 = vsel %vm1996, %v1995, %v1979
        %vm1998 = vcmask 785408
        %v1999 = vsel %vm1998, %v1997, %v1983
        %vm2000 = vcmask 916480
        %v2001 = vsel %vm2000, %v1999, %v1987
        %2002 = vst [vmem:[%s453] sm:$0xff] %v2001
        %s2003 = sand.u32 %s273, 1
        %s2004 = scalar_lea.sflag [#allocation4], %s2003
        %s2005 = sand.u32 %s273, 1
        %s2006 = smul.addr %s2005, 8
        %s2007 = scalar_lea.vmem [#allocation13], %s2006
        // Predicated region
        $region89: #{tpu_custom_call.1} parent=63 // pred_check
          %p2008 = pneg %p283
        $region90: #{tpu_custom_call.1} parent=63 // pred_check_branch
          %2010 = sbr.rel (%p2008) target = $region92
        $region91: #{tpu_custom_call.1} parent=63 // pred_region
          %s2012 = ssub.s32 128, 128
          %2013 = vsyncadd %s2004, %s2012
          %s2014 = smul.addr %s29, 128
          %s2015 = scalar_lea.hbm %s11, %s2014
          %s2017 = sshll.u32 %s2007, 4
          %s2018 = int_to_ptr.vmem [resolvable:$true] %s2017
          %2020 = dma.vmem_to_hbm [thread:$0]  %s2018, 128, %s2015, %s2004
        $region92: #{tpu_custom_call.1} parent=63 // pred_fallthru
          _
      $region64: #{tpu_custom_call.1} parent=5 // pred_fallthru
        _
      %p2021 = scmp.le.s32.totalorder 2, %s24
      // Predicated region
      $region93: #{tpu_custom_call.1} parent=5 // pred_check
        %p2022 = pneg %p2021
      $region94: #{tpu_custom_call.1} parent=5 // pred_check_branch
        %2024 = sbr.rel (%p2022) target = $region96
      $region95: #{tpu_custom_call.1} parent=5 // pred_region
        %s2025 = ssub.s32 %s24, 2
        // Predicated region
        $region97: #{tpu_custom_call.1} parent=95 // pred_check
          %p2026 = pneg %p289
        $region98: #{tpu_custom_call.1} parent=95 // pred_check_branch
          %2028 = sbr.rel (%p2026) target = $region100
        $region99: #{tpu_custom_call.1} parent=95 // pred_region
          %s2029 = sand.u32 %s274, 1
          %s2030 = scalar_lea.sflag [#allocation4], %s2029
          %s2031 = sand.u32 %s274, 1
          %s2032 = smul.addr %s2031, 8
          %s2033 = scalar_lea.vmem [#allocation13], %s2032
          %2034 = dma.done %s2030, 128
        $region100: #{tpu_custom_call.1} parent=95 // pred_fallthru
          _
      $region96: #{tpu_custom_call.1} parent=5 // pred_fallthru
        _
    $region6: #{tpu_custom_call.1} parent=1 // loop_footer
      %s28 = sadd.s32 1, %s24
    $region7: #{tpu_custom_call.1} parent=1 // loop_footer_branch
      %23 = sbr.rel target = $region3
    $region8: #{tpu_custom_call.1} parent=1 // loop_exit
      _
    %2035 = vsyncpa [#allocation3], 1
    %s2036 = scalar_lea.sflag [#allocation3], 1
    %2037 = vsyncpa %s2036, 1
    %2038 = vsyncpa [#allocation6], 1
    %2039 = vsyncpa [#allocation9], 1
    %2040 = vsyncpa [#allocation12], 1
    %2041 = vsyncpa [#allocation4], 1
    %s2042 = scalar_lea.sflag [#allocation4], 1
    %2043 = vsyncpa %s2042, 1

</llo_original>
